<compile_context>
chip_gen: v7x
topology: tpu7x:2x2x1
jax: 0.10.0
libtpu: 0.0.40
codegen_flags: <defaults>
</compile_context>

<pallas_src>
import functools

import numpy as np
import jax
import jax.numpy as jnp
from jax import lax
from jax.experimental import pallas as pl
from jax.experimental.pallas import tpu as pltpu

NEG_SLOPE = 0.01   # PyTorch F.leaky_relu default
BN_EPS = 1e-5


# ------------------------------ Pallas kernel ------------------------------ #

def _bottleneck_kernel(x_ref, mask_ref, w1_ref, b1_ref, w2_ref, b2_ref,
                       w3_ref, b3_ref, o_ref, x9_ref, *, W, matmul_dtype):
    """Fused conv1x1 -> conv3x3 -> conv1x1 (+folded BN, leaky_relu, residual).

    Layout (per grid step = `images_per_step` images): channels on sublanes,
    flattened (image, H*W) on lanes.
      x_ref  : (Cin, Sb)   f32          mask_ref: (8, Sb) f32 (non-center taps)
      w1_ref : (Cw, Cin)   matmul_dtype b1_ref  : (Cw, 1)  f32
      w2_ref : (Cw, 9*Cw)  matmul_dtype b2_ref  : (Cw, 1)  f32
      w3_ref : (Cout, Cw)  matmul_dtype b3_ref  : (Cout,1) f32
      o_ref  : (Cout, Sb)  f32          x9_ref  : (9*Cw, Sb) matmul_dtype scratch
    Sb = images_per_step * H * W  (multiple of 128 -> lane-dense loads/stores).
    """
    Sb = x_ref.shape[1]
    width = w1_ref.shape[0]

    x = x_ref[...]                                         # (Cin, Sb), residual

    # --- conv1 (1x1, BN scale folded into w1) + bias + leaky_relu -----------
    h1 = jnp.dot(w1_ref[...], x.astype(matmul_dtype),
                 preferred_element_type=jnp.float32)
    h1 = h1 + b1_ref[...]
    h1 = jnp.where(h1 >= 0, h1, NEG_SLOPE * h1)            # (Cw, Sb) f32, VMEM only

    # --- conv2 (3x3, stride=1, pad=1, BN folded) -----------------------------
    # 9 lane-rolls of h1 (XLU), zero the wrapped border (incl. image-boundary
    # wrap inside the batch chunk) via precomputed per-tap masks, stream each
    # tap into the x9 VMEM scratch -> one K = 9*Cw MXU matmul.
    # Masks stay (1, Sb); the sublane broadcast inside the mul is cheap at
    # these sizes (kernel is DMA/overhead-bound) vs. shipping (Cw, Sb) masks.
    mask = mask_ref[...]                                   # (8, Sb) f32
    k = 0
    m = 0
    for dy in (-1, 0, 1):
        for dx in (-1, 0, 1):
            if dy == 0 and dx == 0:
                tap = h1                                   # center: mask all-ones
            else:
                d = dy * W + dx                            # flat-index offset
                tap = pltpu.roll(h1, shift=(-d) % Sb, axis=1) * mask[m:m + 1, :]
                m += 1
            x9_ref[pl.ds(k * width, width), :] = tap.astype(matmul_dtype)
            k += 1
    h2 = jnp.dot(w2_ref[...], x9_ref[...], preferred_element_type=jnp.float32)
    h2 = h2 + b2_ref[...]
    h2 = jnp.where(h2 >= 0, h2, NEG_SLOPE * h2)            # (Cw, Sb) f32

    # --- conv3 (1x1, BN folded) + residual add + leaky_relu ------------------
    y = jnp.dot(w3_ref[...], h2.astype(matmul_dtype),
                preferred_element_type=jnp.float32)
    y = y + b3_ref[...] + x
    o_ref[...] = jnp.where(y >= 0, y, NEG_SLOPE * y)       # lane-dense store


# ------------------------------ wrapper ------------------------------------ #

def bn_fold(gamma, beta, running_mean, running_var):
    scale = gamma / jnp.sqrt(running_var + BN_EPS)
    bias = beta - running_mean * scale
    return scale, bias


def bottleneck_forward(x_nchw, params, *, images_per_step=None,
                       matmul_dtype=jnp.float32):
    """x_nchw: (N, Cin, H, W) float32; Cin must equal out_channels * 4."""
    N, Cin, H, W = x_nchw.shape
    S = H * W
    assert S % 128 == 0, "lane-dense layout requires H*W to be a 128-multiple"
    width = params["w1"].shape[0]
    Cout = params["w3"].shape[0]
    assert Cout == Cin, "downsample=None requires in_channels == out_channels*4"

    if images_per_step is None:
        # Amortize per-step overhead, but keep >= 2 parallel grid steps so both
        # v7x TensorCores are used when the batch allows it.
        images_per_step = max(1, N // 2)
    assert N % images_per_step == 0
    Sb = images_per_step * S
    n_steps = N // images_per_step

    s1, b1 = bn_fold(*params["bn1"])
    s2, b2 = bn_fold(*params["bn2"])
    s3, b3 = bn_fold(*params["bn3"])

    # Fold BN scales into the conv weights; kernel only adds per-channel bias.
    # Matmul operands optionally bf16 (MXU-native on all gens); biases stay f32.
    w1_eff = (params["w1"] * s1[:, None]).astype(matmul_dtype)        # (Cw, Cin)
    w2_eff = ((jnp.transpose(params["w2"], (0, 2, 3, 1))              # (co,ky,kx,ci)
               .reshape(width, 9 * width)) * s2[:, None]).astype(matmul_dtype)
    w3_eff = (params["w3"] * s3[:, None]).astype(matmul_dtype)        # (Cout, Cw)
    b1c, b2c, b3c = b1[:, None], b2[:, None], b3[:, None]

    # Border-validity mask for the 8 non-center 3x3 taps (implements zero-pad
    # AND kills roll-wrap across image boundaries within a batch chunk),
    # precomputed host/XLA-side so the kernel needs no iota/div/mod.
    hh = jnp.arange(H)[:, None]
    ww = jnp.arange(W)[None, :]
    masks = []
    for dy in (-1, 0, 1):
        for dx in (-1, 0, 1):
            if dy == 0 and dx == 0:
                continue
            valid = ((hh + dy >= 0) & (hh + dy < H) &
                     (ww + dx >= 0) & (ww + dx < W))
            masks.append(valid.reshape(-1))
    mask8 = jnp.stack(masks).astype(jnp.float32)                      # (8, S)
    mask8 = jnp.tile(mask8, (1, images_per_step))                     # (8, Sb)

    # Batch onto the lane axis: (N, Cin, S) -> (Cin, N*S).
    x_flat = jnp.transpose(x_nchw.reshape(N, Cin, S), (1, 0, 2)).reshape(Cin, N * S)

    kernel = functools.partial(_bottleneck_kernel, W=W, matmul_dtype=matmul_dtype)
    out = pl.pallas_call(
        kernel,
        out_shape=jax.ShapeDtypeStruct((Cout, N * S), jnp.float32),
        grid=(n_steps,),
        in_specs=[
            pl.BlockSpec((Cin, Sb), lambda n: (0, n)),                # x chunk
            pl.BlockSpec((8, Sb), lambda n: (0, 0)),                  # tap mask
            pl.BlockSpec((width, Cin), lambda n: (0, 0)),             # w1
            pl.BlockSpec((width, 1), lambda n: (0, 0)),               # b1
            pl.BlockSpec((width, 9 * width), lambda n: (0, 0)),       # w2
            pl.BlockSpec((width, 1), lambda n: (0, 0)),               # b2
            pl.BlockSpec((Cout, width), lambda n: (0, 0)),            # w3
            pl.BlockSpec((Cout, 1), lambda n: (0, 0)),                # b3
        ],
        out_specs=pl.BlockSpec((Cout, Sb), lambda n: (0, n)),
        scratch_shapes=[pltpu.VMEM((9 * width, Sb), matmul_dtype)],   # x9 staging
        compiler_params=pltpu.CompilerParams(
            dimension_semantics=("parallel",)),
    )(x_flat, mask8, w1_eff, b1c, w2_eff, b2c, w3_eff, b3c)

    return (out.reshape(Cout, N, S)
               .transpose(1, 0, 2)
               .reshape(N, Cout, H, W))


# ------------------------------ reference ---------------------------------- #

def bottleneck_reference(x_nchw, params):
    def lrelu(v):
        return jnp.where(v >= 0, v, NEG_SLOPE * v)

    def bcast(v):
        return v[None, :, None, None]

    hi = lax.Precision.HIGHEST
    s1, b1 = bn_fold(*params["bn1"])
    s2, b2 = bn_fold(*params["bn2"])
    s3, b3 = bn_fold(*params["bn3"])

    h1 = jnp.einsum("oi,nihw->nohw", params["w1"], x_nchw, precision=hi)
    h1 = lrelu(h1 * bcast(s1) + bcast(b1))
    h2 = lax.conv_general_dilated(
        h1, params["w2"], window_strides=(1, 1), padding=((1, 1), (1, 1)),
        dimension_numbers=("NCHW", "OIHW", "NCHW"), precision=hi)
    h2 = lrelu(h2 * bcast(s2) + bcast(b2))
    h3 = jnp.einsum("oi,nihw->nohw", params["w3"], h2, precision=hi)
    h3 = h3 * bcast(s3) + bcast(b3)
    return lrelu(h3 + x_nchw)


# --------------------------------- main ------------------------------------ #

if __name__ == "__main__":
    # Module config: out_channels=16, expansion=4 -> in_channels=64,
    # base_width=64, groups=1 -> width=16, stride=1, dilation=1,
    # downsample=None (residual add requires in_channels == out_channels*4).
    # Channel counts are multiples of 8 (aligned sublanes); H*W = 256 keeps
    # every lane dimension a 128-multiple.  N=4 with 2 images per grid step
    # gives 2 "parallel" steps (both v7x TCs) with batched lanes (Sb=512).
    N, H, W = 4, 16, 16
    out_channels = 16
    width = 16                       # out_channels * (base_width / 64) * groups
    in_channels = out_channels * 4   # 64

    key = jax.random.PRNGKey(0)
    keys = jax.random.split(key, 10)

    x = jax.random.normal(keys[0], (N, in_channels, H, W), jnp.float32)

    params = {
        # conv1x1 weight (out=width, in=in_channels)  [PyTorch OIHW squeezed]
        "w1": 0.2 * jax.random.normal(keys[1], (width, in_channels), jnp.float32),
        # conv3x3 weight OIHW (width, width, 3, 3)
        "w2": 0.2 * jax.random.normal(keys[2], (width, width, 3, 3), jnp.float32),
        # conv1x1 weight (out=out_channels*4, in=width)
        "w3": 0.2 * jax.random.normal(keys[3], (in_channels, width), jnp.float32),
        # BN params: (gamma, beta, running_mean, running_var)  [eval mode]
        "bn1": (1.0 + 0.1 * jax.random.normal(keys[4], (width,), jnp.float32),
                0.1 * jax.random.normal(keys[5], (width,), jnp.float32),
                jnp.zeros((width,), jnp.float32),
                jnp.ones((width,), jnp.float32)),
        "bn2": (1.0 + 0.1 * jax.random.normal(keys[6], (width,), jnp.float32),
                0.1 * jax.random.normal(keys[7], (width,), jnp.float32),
                jnp.zeros((width,), jnp.float32),
                jnp.ones((width,), jnp.float32)),
        "bn3": (1.0 + 0.1 * jax.random.normal(keys[8], (in_channels,), jnp.float32),
                0.1 * jax.random.normal(keys[9], (in_channels,), jnp.float32),
                jnp.zeros((in_channels,), jnp.float32),
                jnp.ones((in_channels,), jnp.float32)),
    }

    ref = jax.block_until_ready(bottleneck_reference(x, params))

    # f32 matmul path: exact-ish, tight tolerance.
    fwd_f32 = jax.jit(functools.partial(bottleneck_forward,
                                        matmul_dtype=jnp.float32))
    out_f32 = jax.block_until_ready(fwd_f32(x, params))
    assert out_f32.shape == (N, in_channels, H, W)
    np.testing.assert_allclose(np.asarray(out_f32), np.asarray(ref),
                               rtol=1e-3, atol=1e-3)

    # bf16 matmul path (recommended on v6e/v7x; f32 elementwise kept for v5e):
    # looser tolerance for bf16 operand rounding.
    fwd_bf16 = jax.jit(functools.partial(bottleneck_forward,
                                         matmul_dtype=jnp.bfloat16))
    out_bf16 = jax.block_until_ready(fwd_bf16(x, params))
    np.testing.assert_allclose(np.asarray(out_bf16), np.asarray(ref),
                               rtol=5e-2, atol=5e-2)

    print("KERNEL_OK")
</pallas_src>

<mosaic_0001>
module attributes {stable_mosaic.version = 11 : i64} {
  func.func @_bottleneck_kernel(%arg0: i32, %arg1: memref<64x512xf32, #tpu.memory_space<vmem>>, %arg2: memref<8x512xf32, #tpu.memory_space<vmem>>, %arg3: memref<16x64xf32, #tpu.memory_space<vmem>>, %arg4: memref<16x1xf32, #tpu.memory_space<vmem>>, %arg5: memref<16x144xf32, #tpu.memory_space<vmem>>, %arg6: memref<16x1xf32, #tpu.memory_space<vmem>>, %arg7: memref<64x16xf32, #tpu.memory_space<vmem>>, %arg8: memref<64x1xf32, #tpu.memory_space<vmem>>, %arg9: memref<64x512xf32, #tpu.memory_space<vmem>>, %arg10: memref<144x512xf32, #tpu.memory_space<vmem>>) attributes {dimension_semantics = [#tpu.dimension_semantics<parallel>], iteration_bounds = array<i64: 2>, scalar_prefetch = 0 : i64, scratch_operands = 1 : i64, tpu.core_type = #tpu.core_type<tc>, window_params = [{transform_indices = @transform_0, window_bounds = array<i64: 64, 512>}, {pipeline_mode = #tpu.pipeline_mode<synchronous>, transform_indices = @transform_1, window_bounds = array<i64: 8, 512>}, {pipeline_mode = #tpu.pipeline_mode<synchronous>, transform_indices = @transform_2, window_bounds = array<i64: 16, 64>}, {pipeline_mode = #tpu.pipeline_mode<synchronous>, transform_indices = @transform_3, window_bounds = array<i64: 16, 1>}, {pipeline_mode = #tpu.pipeline_mode<synchronous>, transform_indices = @transform_4, window_bounds = array<i64: 16, 144>}, {pipeline_mode = #tpu.pipeline_mode<synchronous>, transform_indices = @transform_5, window_bounds = array<i64: 16, 1>}, {pipeline_mode = #tpu.pipeline_mode<synchronous>, transform_indices = @transform_6, window_bounds = array<i64: 64, 16>}, {pipeline_mode = #tpu.pipeline_mode<synchronous>, transform_indices = @transform_7, window_bounds = array<i64: 64, 1>}, {transform_indices = @transform_8, window_bounds = array<i64: 64, 512>}]} {
    %c0 = arith.constant 0 : index
    %c0_0 = arith.constant 0 : index
    %0 = vector.load %arg1[%c0, %c0_0] : memref<64x512xf32, #tpu.memory_space<vmem>>, vector<64x512xf32>
    %c0_1 = arith.constant 0 : index
    %c0_2 = arith.constant 0 : index
    %1 = vector.load %arg3[%c0_1, %c0_2] : memref<16x64xf32, #tpu.memory_space<vmem>>, vector<16x64xf32>
    %cst = arith.constant dense<0.000000e+00> : vector<16x512xf32>
    %2 = tpu.matmul %1, %0, %cst {dimension_numbers = #tpu.dot_dimension_numbers<[1], [0], [0], [1], [0, 0, 1, 1], [], []>} : vector<16x64xf32>, vector<64x512xf32>, vector<16x512xf32> -> vector<16x512xf32>
    %c0_3 = arith.constant 0 : index
    %c0_4 = arith.constant 0 : index
    %3 = vector.load %arg4[%c0_3, %c0_4] : memref<16x1xf32, #tpu.memory_space<vmem>>, vector<16x1xf32>
    %4 = vector.broadcast %3 : vector<16x1xf32> to vector<16x512xf32>
    %5 = arith.addf %2, %4 : vector<16x512xf32>
    %cst_5 = arith.constant 0.000000e+00 : f32
    %6 = vector.broadcast %cst_5 : f32 to vector<16x512xf32>
    %7 = arith.cmpf oge, %5, %6 : vector<16x512xf32>
    %cst_6 = arith.constant 0.00999999977 : f32
    %8 = vector.broadcast %cst_6 : f32 to vector<16x512xf32>
    %9 = arith.mulf %8, %5 : vector<16x512xf32>
    %10 = arith.select %7, %5, %9 : vector<16x512xi1>, vector<16x512xf32>
    %c0_7 = arith.constant 0 : index
    %c0_8 = arith.constant 0 : index
    %11 = vector.load %arg2[%c0_7, %c0_8] : memref<8x512xf32, #tpu.memory_space<vmem>>, vector<8x512xf32>
    %c17_i32 = arith.constant 17 : i32
    %12 = tpu.dynamic_rotate %10 by %c17_i32 dim 1 : vector<16x512xf32>, i32 -> vector<16x512xf32>
    %13 = vector.extract_strided_slice %11 {offsets = [0, 0], sizes = [1, 512], strides = [1, 1]} : vector<8x512xf32> to vector<1x512xf32>
    %14 = vector.broadcast %13 : vector<1x512xf32> to vector<16x512xf32>
    %15 = arith.mulf %12, %14 : vector<16x512xf32>
    %c0_9 = arith.constant 0 : index
    %c0_10 = arith.constant 0 : index
    %16 = vector.load %arg10[%c0_9, %c0_10] : memref<144x512xf32, #tpu.memory_space<vmem>>, vector<16x512xf32>
    tpu.vector_store %arg10[%c0_9, %c0_10], %15 {strides = array<i32>} : memref<144x512xf32, #tpu.memory_space<vmem>>, vector<16x512xf32>,
    %c16_i32 = arith.constant 16 : i32
    %17 = tpu.dynamic_rotate %10 by %c16_i32 dim 1 : vector<16x512xf32>, i32 -> vector<16x512xf32>
    %18 = vector.extract_strided_slice %11 {offsets = [1, 0], sizes = [1, 512], strides = [1, 1]} : vector<8x512xf32> to vector<1x512xf32>
    %19 = vector.broadcast %18 : vector<1x512xf32> to vector<16x512xf32>
    %20 = arith.mulf %17, %19 : vector<16x512xf32>
    %c16 = arith.constant 16 : index
    %c0_11 = arith.constant 0 : index
    %21 = vector.load %arg10[%c16, %c0_11] : memref<144x512xf32, #tpu.memory_space<vmem>>, vector<16x512xf32>
    tpu.vector_store %arg10[%c16, %c0_11], %20 {strides = array<i32>} : memref<144x512xf32, #tpu.memory_space<vmem>>, vector<16x512xf32>,
    %c15_i32 = arith.constant 15 : i32
    %22 = tpu.dynamic_rotate %10 by %c15_i32 dim 1 : vector<16x512xf32>, i32 -> vector<16x512xf32>
    %23 = vector.extract_strided_slice %11 {offsets = [2, 0], sizes = [1, 512], strides = [1, 1]} : vector<8x512xf32> to vector<1x512xf32>
    %24 = vector.broadcast %23 : vector<1x512xf32> to vector<16x512xf32>
    %25 = arith.mulf %22, %24 : vector<16x512xf32>
    %c32 = arith.constant 32 : index
    %c0_12 = arith.constant 0 : index
    %26 = vector.load %arg10[%c32, %c0_12] : memref<144x512xf32, #tpu.memory_space<vmem>>, vector<16x512xf32>
    tpu.vector_store %arg10[%c32, %c0_12], %25 {strides = array<i32>} : memref<144x512xf32, #tpu.memory_space<vmem>>, vector<16x512xf32>,
    %c1_i32 = arith.constant 1 : i32
    %27 = tpu.dynamic_rotate %10 by %c1_i32 dim 1 : vector<16x512xf32>, i32 -> vector<16x512xf32>
    %28 = vector.extract_strided_slice %11 {offsets = [3, 0], sizes = [1, 512], strides = [1, 1]} : vector<8x512xf32> to vector<1x512xf32>
    %29 = vector.broadcast %28 : vector<1x512xf32> to vector<16x512xf32>
    %30 = arith.mulf %27, %29 : vector<16x512xf32>
    %c48 = arith.constant 48 : index
    %c0_13 = arith.constant 0 : index
    %31 = vector.load %arg10[%c48, %c0_13] : memref<144x512xf32, #tpu.memory_space<vmem>>, vector<16x512xf32>
    tpu.vector_store %arg10[%c48, %c0_13], %30 {strides = array<i32>} : memref<144x512xf32, #tpu.memory_space<vmem>>, vector<16x512xf32>,
    %c64 = arith.constant 64 : index
    %c0_14 = arith.constant 0 : index
    %32 = vector.load %arg10[%c64, %c0_14] : memref<144x512xf32, #tpu.memory_space<vmem>>, vector<16x512xf32>
    tpu.vector_store %arg10[%c64, %c0_14], %10 {strides = array<i32>} : memref<144x512xf32, #tpu.memory_space<vmem>>, vector<16x512xf32>,
    %c511_i32 = arith.constant 511 : i32
    %33 = tpu.dynamic_rotate %10 by %c511_i32 dim 1 : vector<16x512xf32>, i32 -> vector<16x512xf32>
    %34 = vector.extract_strided_slice %11 {offsets = [4, 0], sizes = [1, 512], strides = [1, 1]} : vector<8x512xf32> to vector<1x512xf32>
    %35 = vector.broadcast %34 : vector<1x512xf32> to vector<16x512xf32>
    %36 = arith.mulf %33, %35 : vector<16x512xf32>
    %c80 = arith.constant 80 : index
    %c0_15 = arith.constant 0 : index
    %37 = vector.load %arg10[%c80, %c0_15] : memref<144x512xf32, #tpu.memory_space<vmem>>, vector<16x512xf32>
    tpu.vector_store %arg10[%c80, %c0_15], %36 {strides = array<i32>} : memref<144x512xf32, #tpu.memory_space<vmem>>, vector<16x512xf32>,
    %c497_i32 = arith.constant 497 : i32
    %38 = tpu.dynamic_rotate %10 by %c497_i32 dim 1 : vector<16x512xf32>, i32 -> vector<16x512xf32>
    %39 = vector.extract_strided_slice %11 {offsets = [5, 0], sizes = [1, 512], strides = [1, 1]} : vector<8x512xf32> to vector<1x512xf32>
    %40 = vector.broadcast %39 : vector<1x512xf32> to vector<16x512xf32>
    %41 = arith.mulf %38, %40 : vector<16x512xf32>
    %c96 = arith.constant 96 : index
    %c0_16 = arith.constant 0 : index
    %42 = vector.load %arg10[%c96, %c0_16] : memref<144x512xf32, #tpu.memory_space<vmem>>, vector<16x512xf32>
    tpu.vector_store %arg10[%c96, %c0_16], %41 {strides = array<i32>} : memref<144x512xf32, #tpu.memory_space<vmem>>, vector<16x512xf32>,
    %c496_i32 = arith.constant 496 : i32
    %43 = tpu.dynamic_rotate %10 by %c496_i32 dim 1 : vector<16x512xf32>, i32 -> vector<16x512xf32>
    %44 = vector.extract_strided_slice %11 {offsets = [6, 0], sizes = [1, 512], strides = [1, 1]} : vector<8x512xf32> to vector<1x512xf32>
    %45 = vector.broadcast %44 : vector<1x512xf32> to vector<16x512xf32>
    %46 = arith.mulf %43, %45 : vector<16x512xf32>
    %c112 = arith.constant 112 : index
    %c0_17 = arith.constant 0 : index
    %47 = vector.load %arg10[%c112, %c0_17] : memref<144x512xf32, #tpu.memory_space<vmem>>, vector<16x512xf32>
    tpu.vector_store %arg10[%c112, %c0_17], %46 {strides = array<i32>} : memref<144x512xf32, #tpu.memory_space<vmem>>, vector<16x512xf32>,
    %c495_i32 = arith.constant 495 : i32
    %48 = tpu.dynamic_rotate %10 by %c495_i32 dim 1 : vector<16x512xf32>, i32 -> vector<16x512xf32>
    %49 = vector.extract_strided_slice %11 {offsets = [7, 0], sizes = [1, 512], strides = [1, 1]} : vector<8x512xf32> to vector<1x512xf32>
    %50 = vector.broadcast %49 : vector<1x512xf32> to vector<16x512xf32>
    %51 = arith.mulf %48, %50 : vector<16x512xf32>
    %c128 = arith.constant 128 : index
    %c0_18 = arith.constant 0 : index
    %52 = vector.load %arg10[%c128, %c0_18] : memref<144x512xf32, #tpu.memory_space<vmem>>, vector<16x512xf32>
    tpu.vector_store %arg10[%c128, %c0_18], %51 {strides = array<i32>} : memref<144x512xf32, #tpu.memory_space<vmem>>, vector<16x512xf32>,
    %c0_19 = arith.constant 0 : index
    %c0_20 = arith.constant 0 : index
    %53 = vector.load %arg5[%c0_19, %c0_20] : memref<16x144xf32, #tpu.memory_space<vmem>>, vector<16x144xf32>
    %c0_21 = arith.constant 0 : index
    %c0_22 = arith.constant 0 : index
    %54 = vector.load %arg10[%c0_21, %c0_22] : memref<144x512xf32, #tpu.memory_space<vmem>>, vector<144x512xf32>
    %cst_23 = arith.constant dense<0.000000e+00> : vector<16x512xf32>
    %55 = tpu.matmul %53, %54, %cst_23 {dimension_numbers = #tpu.dot_dimension_numbers<[1], [0], [0], [1], [0, 0, 1, 1], [], []>} : vector<16x144xf32>, vector<144x512xf32>, vector<16x512xf32> -> vector<16x512xf32>
    %c0_24 = arith.constant 0 : index
    %c0_25 = arith.constant 0 : index
    %56 = vector.load %arg6[%c0_24, %c0_25] : memref<16x1xf32, #tpu.memory_space<vmem>>, vector<16x1xf32>
    %57 = vector.broadcast %56 : vector<16x1xf32> to vector<16x512xf32>
    %58 = arith.addf %55, %57 : vector<16x512xf32>
    %cst_26 = arith.constant 0.000000e+00 : f32
    %59 = vector.broadcast %cst_26 : f32 to vector<16x512xf32>
    %60 = arith.cmpf oge, %58, %59 : vector<16x512xf32>
    %cst_27 = arith.constant 0.00999999977 : f32
    %61 = vector.broadcast %cst_27 : f32 to vector<16x512xf32>
    %62 = arith.mulf %61, %58 : vector<16x512xf32>
    %63 = arith.select %60, %58, %62 : vector<16x512xi1>, vector<16x512xf32>
    %c0_28 = arith.constant 0 : index
    %c0_29 = arith.constant 0 : index
    %64 = vector.load %arg7[%c0_28, %c0_29] : memref<64x16xf32, #tpu.memory_space<vmem>>, vector<64x16xf32>
    %cst_30 = arith.constant dense<0.000000e+00> : vector<64x512xf32>
    %65 = tpu.matmul %64, %63, %cst_30 {dimension_numbers = #tpu.dot_dimension_numbers<[1], [0], [0], [1], [0, 0, 1, 1], [], []>} : vector<64x16xf32>, vector<16x512xf32>, vector<64x512xf32> -> vector<64x512xf32>
    %c0_31 = arith.constant 0 : index
    %c0_32 = arith.constant 0 : index
    %66 = vector.load %arg8[%c0_31, %c0_32] : memref<64x1xf32, #tpu.memory_space<vmem>>, vector<64x1xf32>
    %67 = vector.broadcast %66 : vector<64x1xf32> to vector<64x512xf32>
    %68 = arith.addf %65, %67 : vector<64x512xf32>
    %69 = arith.addf %68, %0 : vector<64x512xf32>
    %cst_33 = arith.constant 0.000000e+00 : f32
    %70 = vector.broadcast %cst_33 : f32 to vector<64x512xf32>
    %71 = arith.cmpf oge, %69, %70 : vector<64x512xf32>
    %cst_34 = arith.constant 0.00999999977 : f32
    %72 = vector.broadcast %cst_34 : f32 to vector<64x512xf32>
    %73 = arith.mulf %72, %69 : vector<64x512xf32>
    %74 = arith.select %71, %69, %73 : vector<64x512xi1>, vector<64x512xf32>
    %c0_35 = arith.constant 0 : index
    %c0_36 = arith.constant 0 : index
    %75 = vector.load %arg9[%c0_35, %c0_36] : memref<64x512xf32, #tpu.memory_space<vmem>>, vector<64x512xf32>
    tpu.vector_store %arg9[%c0_35, %c0_36], %74 {strides = array<i32>} : memref<64x512xf32, #tpu.memory_space<vmem>>, vector<64x512xf32>,
    return
  }
  func.func @transform_0(%arg0: i32) -> (i32, i32) {
    %c0_i32 = arith.constant 0 : i32
    %c0_i32_0 = arith.constant 0 : i32
    return %c0_i32, %arg0 : i32, i32
  }
  func.func @transform_1(%arg0: i32) -> (i32, i32) {
    %c0_i32 = arith.constant 0 : i32
    %c0_i32_0 = arith.constant 0 : i32
    %c0_i32_1 = arith.constant 0 : i32
    return %c0_i32, %c0_i32_0 : i32, i32
  }
  func.func @transform_2(%arg0: i32) -> (i32, i32) {
    %c0_i32 = arith.constant 0 : i32
    %c0_i32_0 = arith.constant 0 : i32
    %c0_i32_1 = arith.constant 0 : i32
    return %c0_i32, %c0_i32_0 : i32, i32
  }
  func.func @transform_3(%arg0: i32) -> (i32, i32) {
    %c0_i32 = arith.constant 0 : i32
    %c0_i32_0 = arith.constant 0 : i32
    %c0_i32_1 = arith.constant 0 : i32
    return %c0_i32, %c0_i32_0 : i32, i32
  }
  func.func @transform_4(%arg0: i32) -> (i32, i32) {
    %c0_i32 = arith.constant 0 : i32
    %c0_i32_0 = arith.constant 0 : i32
    %c0_i32_1 = arith.constant 0 : i32
    return %c0_i32, %c0_i32_0 : i32, i32
  }
  func.func @transform_5(%arg0: i32) -> (i32, i32) {
    %c0_i32 = arith.constant 0 : i32
    %c0_i32_0 = arith.constant 0 : i32
    %c0_i32_1 = arith.constant 0 : i32
    return %c0_i32, %c0_i32_0 : i32, i32
  }
  func.func @transform_6(%arg0: i32) -> (i32, i32) {
    %c0_i32 = arith.constant 0 : i32
    %c0_i32_0 = arith.constant 0 : i32
    %c0_i32_1 = arith.constant 0 : i32
    return %c0_i32, %c0_i32_0 : i32, i32
  }
  func.func @transform_7(%arg0: i32) -> (i32, i32) {
    %c0_i32 = arith.constant 0 : i32
    %c0_i32_0 = arith.constant 0 : i32
    %c0_i32_1 = arith.constant 0 : i32
    return %c0_i32, %c0_i32_0 : i32, i32
  }
  func.func @transform_8(%arg0: i32) -> (i32, i32) {
    %c0_i32 = arith.constant 0 : i32
    %c0_i32_0 = arith.constant 0 : i32
    return %c0_i32, %arg0 : i32, i32
  }
}

</mosaic_0001>

<llo_original>
// kernel: bottleneck_forward.1
$region0: #{bottleneck_forward.1}
  #allocation0 [shape = 'u32[]', space=smem, size = 0x4, offset = 0x4, fixed_abs, tag = 'smem constant byte address 0x4 - core index']
  #allocation1 [shape = 'u32[144,128]{1,0:T(1,128)}', space=vmem, size = 0x12000, scoped, tag = 'internal scratch']
  #allocation2 [shape = 'f32[144,512]{1,0:T(8,128)}', space=vmem, size = 0x48000, scoped, tag = 'scratch operand']
  %s0 = inlined_call_operand.vmem [shape: f32[64,1024], index: 0, kind: input, shape index: {}]
  %s1 = inlined_call_operand.vmem [shape: f32[8,512], index: 1, kind: input, shape index: {}]
  %s2 = inlined_call_operand.vmem [shape: f32[16,64], index: 2, kind: input, shape index: {}]
  %s3 = inlined_call_operand.vmem [shape: f32[16,1], index: 3, kind: input, shape index: {}]
  %s4 = inlined_call_operand.vmem [shape: f32[16,144], index: 4, kind: input, shape index: {}]
  %s5 = inlined_call_operand.vmem [shape: f32[16,1], index: 5, kind: input, shape index: {}]
  %s6 = inlined_call_operand.vmem [shape: f32[64,16], index: 6, kind: input, shape index: {}]
  %s7 = inlined_call_operand.vmem [shape: f32[64,1], index: 7, kind: input, shape index: {}]
  %s8 = inlined_call_operand.vmem [shape: f32[64,1024], index: 8, kind: output, shape index: {}]
  %s9 = sld [smem:[#allocation0]]
  $region107: #{bottleneck_forward.1} parent=0
    _
  %s11 = ssub.s32 1, %s9
  %s12 = scalar_select 0, %s11, %s9
  $region1: #{bottleneck_forward.1} parent=0
    #allocation3 [shape = 'u8[262144]{0}', space=vmem, size = 0x40000, scoped, tag = 'input window, operand 0']
    #allocation4 [shape = 'u8[262144]{0}', space=vmem, size = 0x40000, scoped, tag = 'output window, operand 0']
    loop: start=0, step=1, limit=4
    $region2: #{bottleneck_forward.1} parent=1 // loop_pre_header
      _
    $region3: #{bottleneck_forward.1} parent=1 // loop_header
      %s14 = sphi 0, %s18
      %p15 = scmp.ge.s32.totalorder %s14, 4
      %s24 = sphi 0, %s26
      %s27 = sphi 0, %s24
      %s28 = sphi 0, %s27
      %s44 = sphi 0, %s28
      %s48 = sphi 0, %s48
      %s50 = sphi 0, %s48
      %s51 = sphi 0, %s50
      %s65 = sphi 0, %s51
      %s69 = sphi 0, %s69
      %s71 = sphi 0, %s69
      %s72 = sphi 0, %s71
      %s86 = sphi 0, %s72
      %s90 = sphi 0, %s90
      %s92 = sphi 0, %s90
      %s93 = sphi 0, %s92
      %s107 = sphi 0, %s93
      %s111 = sphi 0, %s111
      %s113 = sphi 0, %s111
      %s114 = sphi 0, %s113
      %s128 = sphi 0, %s114
      %s132 = sphi 0, %s132
      %s134 = sphi 0, %s132
      %s135 = sphi 0, %s134
      %s149 = sphi 0, %s135
      %s153 = sphi 0, %s153
      %s155 = sphi 0, %s153
      %s156 = sphi 0, %s155
      %s170 = sphi 0, %s156
      %s174 = sphi 0, %s174
      %s176 = sphi 0, %s174
      %s177 = sphi 0, %s176
      %s191 = sphi 0, %s177
      %s197 = sphi 0, %s199
      %s200 = sphi 0, %s197
      %s201 = sphi 0, %s200
      %s217 = sphi 0, %s201
    $region4: #{bottleneck_forward.1} parent=1 // loop_header_branch
      %17 = sbr.rel (%p15) target = $region8
    $region5: #{bottleneck_forward.1} parent=1 // loop_body
      %s19 = ssub.s32 %s14, 1
      %s20 = ssub.s32 %s14, 2
      %s21 = sadd.s32 %s14, 1
      %s22 = ssub.s32 %s14, %s21
      %p23 = scmp.eq.s32.totalorder %s22, 0
      %s25 = sadd.s32 %s24, 1
      %s26 = scalar_select %p23, %s24, %s25
      %p29 = pneg %p23
      %p30 = scmp.eq.s32.totalorder %s14, 1
      %p31 = por %p29, %p30
      %p32 = scmp.ne.s32.totalorder %s24, %s27
      %p33 = scmp.eq.s32.totalorder %s14, 0
      %p34 = por %p32, %p33
      %p35 = scmp.ne.s32.totalorder %s24, %s27
      %p36 = scmp.eq.s32.totalorder %s19, 1
      %p37 = por %p35, %p36
      %p38 = scmp.ne.s32.totalorder %s27, %s28
      %p39 = scmp.eq.s32.totalorder %s19, 0
      %p40 = por %p38, %p39
      %p41 = scmp.ne.s32.totalorder %s27, %s28
      %p42 = scmp.eq.s32.totalorder %s20, 1
      %p43 = por %p41, %p42
      %p45 = scmp.ne.s32.totalorder %s28, %s44
      %p46 = scmp.eq.s32.totalorder %s20, 0
      %p47 = por %p45, %p46
      %s49 = sadd.s32 %s48, 1
      %p52 = scmp.eq.s32.totalorder %s14, 1
      %p53 = scmp.ne.s32.totalorder %s48, %s50
      %p54 = scmp.eq.s32.totalorder %s14, 0
      %p55 = por %p53, %p54
      %p56 = scmp.ne.s32.totalorder %s48, %s50
      %p57 = scmp.eq.s32.totalorder %s19, 1
      %p58 = por %p56, %p57
      %p59 = scmp.ne.s32.totalorder %s50, %s51
      %p60 = scmp.eq.s32.totalorder %s19, 0
      %p61 = por %p59, %p60
      %p62 = scmp.ne.s32.totalorder %s50, %s51
      %p63 = scmp.eq.s32.totalorder %s20, 1
      %p64 = por %p62, %p63
      %p66 = scmp.ne.s32.totalorder %s51, %s65
      %p67 = scmp.eq.s32.totalorder %s20, 0
      %p68 = por %p66, %p67
      %s70 = sadd.s32 %s69, 1
      %p73 = scmp.eq.s32.totalorder %s14, 1
      %p74 = scmp.ne.s32.totalorder %s69, %s71
      %p75 = scmp.eq.s32.totalorder %s14, 0
      %p76 = por %p74, %p75
      %p77 = scmp.ne.s32.totalorder %s69, %s71
      %p78 = scmp.eq.s32.totalorder %s19, 1
      %p79 = por %p77, %p78
      %p80 = scmp.ne.s32.totalorder %s71, %s72
      %p81 = scmp.eq.s32.totalorder %s19, 0
      %p82 = por %p80, %p81
      %p83 = scmp.ne.s32.totalorder %s71, %s72
      %p84 = scmp.eq.s32.totalorder %s20, 1
      %p85 = por %p83, %p84
      %p87 = scmp.ne.s32.totalorder %s72, %s86
      %p88 = scmp.eq.s32.totalorder %s20, 0
      %p89 = por %p87, %p88
      %s91 = sadd.s32 %s90, 1
      %p94 = scmp.eq.s32.totalorder %s14, 1
      %p95 = scmp.ne.s32.totalorder %s90, %s92
      %p96 = scmp.eq.s32.totalorder %s14, 0
      %p97 = por %p95, %p96
      %p98 = scmp.ne.s32.totalorder %s90, %s92
      %p99 = scmp.eq.s32.totalorder %s19, 1
      %p100 = por %p98, %p99
      %p101 = scmp.ne.s32.totalorder %s92, %s93
      %p102 = scmp.eq.s32.totalorder %s19, 0
      %p103 = por %p101, %p102
      %p104 = scmp.ne.s32.totalorder %s92, %s93
      %p105 = scmp.eq.s32.totalorder %s20, 1
      %p106 = por %p104, %p105
      %p108 = scmp.ne.s32.totalorder %s93, %s107
      %p109 = scmp.eq.s32.totalorder %s20, 0
      %p110 = por %p108, %p109
      %s112 = sadd.s32 %s111, 1
      %p115 = scmp.eq.s32.totalorder %s14, 1
      %p116 = scmp.ne.s32.totalorder %s111, %s113
      %p117 = scmp.eq.s32.totalorder %s14, 0
      %p118 = por %p116, %p117
      %p119 = scmp.ne.s32.totalorder %s111, %s113
      %p120 = scmp.eq.s32.totalorder %s19, 1
      %p121 = por %p119, %p120
      %p122 = scmp.ne.s32.totalorder %s113, %s114
      %p123 = scmp.eq.s32.totalorder %s19, 0
      %p124 = por %p122, %p123
      %p125 = scmp.ne.s32.totalorder %s113, %s114
      %p126 = scmp.eq.s32.totalorder %s20, 1
      %p127 = por %p125, %p126
      %p129 = scmp.ne.s32.totalorder %s114, %s128
      %p130 = scmp.eq.s32.totalorder %s20, 0
      %p131 = por %p129, %p130
      %s133 = sadd.s32 %s132, 1
      %p136 = scmp.eq.s32.totalorder %s14, 1
      %p137 = scmp.ne.s32.totalorder %s132, %s134
      %p138 = scmp.eq.s32.totalorder %s14, 0
      %p139 = por %p137, %p138
      %p140 = scmp.ne.s32.totalorder %s132, %s134
      %p141 = scmp.eq.s32.totalorder %s19, 1
      %p142 = por %p140, %p141
      %p143 = scmp.ne.s32.totalorder %s134, %s135
      %p144 = scmp.eq.s32.totalorder %s19, 0
      %p145 = por %p143, %p144
      %p146 = scmp.ne.s32.totalorder %s134, %s135
      %p147 = scmp.eq.s32.totalorder %s20, 1
      %p148 = por %p146, %p147
      %p150 = scmp.ne.s32.totalorder %s135, %s149
      %p151 = scmp.eq.s32.totalorder %s20, 0
      %p152 = por %p150, %p151
      %s154 = sadd.s32 %s153, 1
      %p157 = scmp.eq.s32.totalorder %s14, 1
      %p158 = scmp.ne.s32.totalorder %s153, %s155
      %p159 = scmp.eq.s32.totalorder %s14, 0
      %p160 = por %p158, %p159
      %p161 = scmp.ne.s32.totalorder %s153, %s155
      %p162 = scmp.eq.s32.totalorder %s19, 1
      %p163 = por %p161, %p162
      %p164 = scmp.ne.s32.totalorder %s155, %s156
      %p165 = scmp.eq.s32.totalorder %s19, 0
      %p166 = por %p164, %p165
      %p167 = scmp.ne.s32.totalorder %s155, %s156
      %p168 = scmp.eq.s32.totalorder %s20, 1
      %p169 = por %p167, %p168
      %p171 = scmp.ne.s32.totalorder %s156, %s170
      %p172 = scmp.eq.s32.totalorder %s20, 0
      %p173 = por %p171, %p172
      %s175 = sadd.s32 %s174, 1
      %p178 = scmp.eq.s32.totalorder %s14, 1
      %p179 = scmp.ne.s32.totalorder %s174, %s176
      %p180 = scmp.eq.s32.totalorder %s14, 0
      %p181 = por %p179, %p180
      %p182 = scmp.ne.s32.totalorder %s174, %s176
      %p183 = scmp.eq.s32.totalorder %s19, 1
      %p184 = por %p182, %p183
      %p185 = scmp.ne.s32.totalorder %s176, %s177
      %p186 = scmp.eq.s32.totalorder %s19, 0
      %p187 = por %p185, %p186
      %p188 = scmp.ne.s32.totalorder %s176, %s177
      %p189 = scmp.eq.s32.totalorder %s20, 1
      %p190 = por %p188, %p189
      %p192 = scmp.ne.s32.totalorder %s177, %s191
      %p193 = scmp.eq.s32.totalorder %s20, 0
      %p194 = por %p192, %p193
      %s195 = ssub.s32 %s14, %s21
      %p196 = scmp.eq.s32.totalorder %s195, 0
      %s198 = sadd.s32 %s197, 1
      %s199 = scalar_select %p196, %s197, %s198
      %p202 = pneg %p196
      %p203 = scmp.eq.s32.totalorder %s14, 1
      %p204 = por %p202, %p203
      %p205 = scmp.ne.s32.totalorder %s197, %s200
      %p206 = scmp.eq.s32.totalorder %s14, 0
      %p207 = por %p205, %p206
      %p208 = scmp.ne.s32.totalorder %s197, %s200
      %p209 = scmp.eq.s32.totalorder %s19, 1
      %p210 = por %p208, %p209
      %p211 = scmp.ne.s32.totalorder %s200, %s201
      %p212 = scmp.eq.s32.totalorder %s19, 0
      %p213 = por %p211, %p212
      %p214 = scmp.ne.s32.totalorder %s200, %s201
      %p215 = scmp.eq.s32.totalorder %s20, 1
      %p216 = por %p214, %p215
      %p218 = scmp.ne.s32.totalorder %s201, %s217
      %p219 = scmp.eq.s32.totalorder %s20, 0
      %p220 = por %p218, %p219
      %p221 = scmp.le.s32.totalorder 1, %s14
      %p222 = scmp.lt.s32.totalorder %s14, 3
      %p223 = pnand %p221, %p222
      %p224 = pneg %p223
      // Predicated region
      $region9: #{bottleneck_forward.1} parent=5 // pred_check
        _
      $region10: #{bottleneck_forward.1} parent=5 // pred_check_branch
        %226 = sbr.rel (%p223) target = $region12
      $region11: #{bottleneck_forward.1} parent=5 // pred_region
        %s227 = ssub.s32 %s14, 1
        // Predicated region
        $region13: #{bottleneck_forward.1} parent=11 // pred_check
          %p228 = pneg %p61
        $region14: #{bottleneck_forward.1} parent=11 // pred_check_branch
          %230 = sbr.rel (%p228) target = $region16
        $region15: #{bottleneck_forward.1} parent=11 // pred_region
          _
        $region16: #{bottleneck_forward.1} parent=11 // pred_fallthru
          _
        // Predicated region
        $region17: #{bottleneck_forward.1} parent=11 // pred_check
          %p231 = pneg %p82
        $region18: #{bottleneck_forward.1} parent=11 // pred_check_branch
          %233 = sbr.rel (%p231) target = $region20
        $region19: #{bottleneck_forward.1} parent=11 // pred_region
          _
        $region20: #{bottleneck_forward.1} parent=11 // pred_fallthru
          _
        // Predicated region
        $region21: #{bottleneck_forward.1} parent=11 // pred_check
          %p234 = pneg %p103
        $region22: #{bottleneck_forward.1} parent=11 // pred_check_branch
          %236 = sbr.rel (%p234) target = $region24
        $region23: #{bottleneck_forward.1} parent=11 // pred_region
          _
        $region24: #{bottleneck_forward.1} parent=11 // pred_fallthru
          _
        // Predicated region
        $region25: #{bottleneck_forward.1} parent=11 // pred_check
          %p237 = pneg %p124
        $region26: #{bottleneck_forward.1} parent=11 // pred_check_branch
          %239 = sbr.rel (%p237) target = $region28
        $region27: #{bottleneck_forward.1} parent=11 // pred_region
          _
        $region28: #{bottleneck_forward.1} parent=11 // pred_fallthru
          _
        // Predicated region
        $region29: #{bottleneck_forward.1} parent=11 // pred_check
          %p240 = pneg %p145
        $region30: #{bottleneck_forward.1} parent=11 // pred_check_branch
          %242 = sbr.rel (%p240) target = $region32
        $region31: #{bottleneck_forward.1} parent=11 // pred_region
          _
        $region32: #{bottleneck_forward.1} parent=11 // pred_fallthru
          _
        // Predicated region
        $region33: #{bottleneck_forward.1} parent=11 // pred_check
          %p243 = pneg %p166
        $region34: #{bottleneck_forward.1} parent=11 // pred_check_branch
          %245 = sbr.rel (%p243) target = $region36
        $region35: #{bottleneck_forward.1} parent=11 // pred_region
          _
        $region36: #{bottleneck_forward.1} parent=11 // pred_fallthru
          _
        // Predicated region
        $region37: #{bottleneck_forward.1} parent=11 // pred_check
          %p246 = pneg %p187
        $region38: #{bottleneck_forward.1} parent=11 // pred_check_branch
          %248 = sbr.rel (%p246) target = $region40
        $region39: #{bottleneck_forward.1} parent=11 // pred_region
          _
        $region40: #{bottleneck_forward.1} parent=11 // pred_fallthru
          _
      $region12: #{bottleneck_forward.1} parent=5 // pred_fallthru
        _
      %p249 = scmp.lt.s32.totalorder %s14, 2
      // Predicated region
      $region41: #{bottleneck_forward.1} parent=5 // pred_check
        %p250 = pneg %p249
      $region42: #{bottleneck_forward.1} parent=5 // pred_check_branch
        %252 = sbr.rel (%p250) target = $region44
      $region43: #{bottleneck_forward.1} parent=5 // pred_region
        // Predicated region
        $region45: #{bottleneck_forward.1} parent=43 // pred_check
          %p253 = pneg %p34
        $region46: #{bottleneck_forward.1} parent=43 // pred_check_branch
          %255 = sbr.rel (%p253) target = $region48
        $region47: #{bottleneck_forward.1} parent=43 // pred_region
          %s256 = sand.u32 %s24, 1
          %s257 = sand.u32 %s24, 1
          %s258 = smul.addr %s257, 256
          %s259 = scalar_lea.vmem [#allocation3], %s258
          %s260 = smul.u32 4, %s14
          %s261 = smul.addr %s260, 8
          %s262 = scalar_lea.vmem %s0, %s261
          // Predicated region
          $region49: #{bottleneck_forward.1} parent=47 // pred_check
            _
          $region50: #{bottleneck_forward.1} parent=47 // pred_check_branch
            %264 = sbr.rel (0) target = $region52
          $region51: #{bottleneck_forward.1} parent=47 // pred_region
            // Predicated region
            $region53: #{bottleneck_forward.1} parent=51 // pred_check
              _
            $region54: #{bottleneck_forward.1} parent=51 // pred_check_branch
              %266 = sbr.rel (0) target = $region56
            $region55: #{bottleneck_forward.1} parent=51 // pred_region
              loop: start=0, step=1, limit=1
              $region57: #{bottleneck_forward.1} parent=55 // loop_pre_header
                _
              $region58: #{bottleneck_forward.1} parent=55 // loop_header
                %s268 = sphi 0, %s272
                %p269 = scmp.ge.s32.totalorder %s268, 1
                %s273 = sphi %s262, %s262
                %s274 = sphi %s259, %s259
              $region59: #{bottleneck_forward.1} parent=55 // loop_header_branch
                %271 = sbr.rel (%p269) target = $region63
              $region60: #{bottleneck_forward.1} parent=55 // loop_body
                %v275 = vld [vmem:[%s273] sm:$0xff]
                %276 = vst [vmem:[%s274] sm:$0xff] %v275
                %v277 = vld [vmem:[%s273 + $0x8] sm:$0xff]
                %278 = vst [vmem:[%s274 + $0x8] sm:$0xff] %v277
                %v279 = vld [vmem:[%s273 + $0x10] sm:$0xff]
                %280 = vst [vmem:[%s274 + $0x10] sm:$0xff] %v279
                %v281 = vld [vmem:[%s273 + $0x18] sm:$0xff]
                %282 = vst [vmem:[%s274 + $0x18] sm:$0xff] %v281
                %v283 = vld [vmem:[%s273 + $0x40] sm:$0xff]
                %284 = vst [vmem:[%s274 + $0x20] sm:$0xff] %v283
                %v285 = vld [vmem:[%s273 + $0x48] sm:$0xff]
                %286 = vst [vmem:[%s274 + $0x28] sm:$0xff] %v285
                %v287 = vld [vmem:[%s273 + $0x50] sm:$0xff]
                %288 = vst [vmem:[%s274 + $0x30] sm:$0xff] %v287
                %v289 = vld [vmem:[%s273 + $0x58] sm:$0xff]
                %290 = vst [vmem:[%s274 + $0x38] sm:$0xff] %v289
                %v291 = vld [vmem:[%s273 + $0x80] sm:$0xff]
                %292 = vst [vmem:[%s274 + $0x40] sm:$0xff] %v291
                %v293 = vld [vmem:[%s273 + $0x88] sm:$0xff]
                %294 = vst [vmem:[%s274 + $0x48] sm:$0xff] %v293
                %v295 = vld [vmem:[%s273 + $0x90] sm:$0xff]
                %296 = vst [vmem:[%s274 + $0x50] sm:$0xff] %v295
                %v297 = vld [vmem:[%s273 + $0x98] sm:$0xff]
                %298 = vst [vmem:[%s274 + $0x58] sm:$0xff] %v297
                %v299 = vld [vmem:[%s273 + $0xc0] sm:$0xff]
                %300 = vst [vmem:[%s274 + $0x60] sm:$0xff] %v299
                %v301 = vld [vmem:[%s273 + $0xc8] sm:$0xff]
                %302 = vst [vmem:[%s274 + $0x68] sm:$0xff] %v301
                %v303 = vld [vmem:[%s273 + $0xd0] sm:$0xff]
                %304 = vst [vmem:[%s274 + $0x70] sm:$0xff] %v303
                %v305 = vld [vmem:[%s273 + $0xd8] sm:$0xff]
                %306 = vst [vmem:[%s274 + $0x78] sm:$0xff] %v305
                %v307 = vld [vmem:[%s273 + $0x100] sm:$0xff]
                %308 = vst [vmem:[%s274 + $0x80] sm:$0xff] %v307
                %v309 = vld [vmem:[%s273 + $0x108] sm:$0xff]
                %310 = vst [vmem:[%s274 + $0x88] sm:$0xff] %v309
                %v311 = vld [vmem:[%s273 + $0x110] sm:$0xff]
                %312 = vst [vmem:[%s274 + $0x90] sm:$0xff] %v311
                %v313 = vld [vmem:[%s273 + $0x118] sm:$0xff]
                %314 = vst [vmem:[%s274 + $0x98] sm:$0xff] %v313
                %v315 = vld [vmem:[%s273 + $0x140] sm:$0xff]
                %316 = vst [vmem:[%s274 + $0xa0] sm:$0xff] %v315
                %v317 = vld [vmem:[%s273 + $0x148] sm:$0xff]
                %318 = vst [vmem:[%s274 + $0xa8] sm:$0xff] %v317
                %v319 = vld [vmem:[%s273 + $0x150] sm:$0xff]
                %320 = vst [vmem:[%s274 + $0xb0] sm:$0xff] %v319
                %v321 = vld [vmem:[%s273 + $0x158] sm:$0xff]
                %322 = vst [vmem:[%s274 + $0xb8] sm:$0xff] %v321
                %v323 = vld [vmem:[%s273 + $0x180] sm:$0xff]
                %324 = vst [vmem:[%s274 + $0xc0] sm:$0xff] %v323
                %v325 = vld [vmem:[%s273 + $0x188] sm:$0xff]
                %326 = vst [vmem:[%s274 + $0xc8] sm:$0xff] %v325
                %v327 = vld [vmem:[%s273 + $0x190] sm:$0xff]
                %328 = vst [vmem:[%s274 + $0xd0] sm:$0xff] %v327
                %v329 = vld [vmem:[%s273 + $0x198] sm:$0xff]
                %330 = vst [vmem:[%s274 + $0xd8] sm:$0xff] %v329
                %v331 = vld [vmem:[%s273 + $0x1c0] sm:$0xff]
                %332 = vst [vmem:[%s274 + $0xe0] sm:$0xff] %v331
                %v333 = vld [vmem:[%s273 + $0x1c8] sm:$0xff]
                %334 = vst [vmem:[%s274 + $0xe8] sm:$0xff] %v333
                %v335 = vld [vmem:[%s273 + $0x1d0] sm:$0xff]
                %336 = vst [vmem:[%s274 + $0xf0] sm:$0xff] %v335
                %v337 = vld [vmem:[%s273 + $0x1d8] sm:$0xff]
                %338 = vst [vmem:[%s274 + $0xf8] sm:$0xff] %v337
              $region61: #{bottleneck_forward.1} parent=55 // loop_footer
                %s272 = sadd.s32 1, %s268
              $region62: #{bottleneck_forward.1} parent=55 // loop_footer_branch
                %267 = sbr.rel target = $region58
              $region63: #{bottleneck_forward.1} parent=55 // loop_exit
                _
            $region56: #{bottleneck_forward.1} parent=51 // pred_fallthru
              _
            // Predicated region
            $region64: #{bottleneck_forward.1} parent=51 // pred_check
              _
            $region65: #{bottleneck_forward.1} parent=51 // pred_check_branch
              %340 = sbr.rel target = $region67
            $region66: #{bottleneck_forward.1} parent=51 // pred_region
              _
            $region67: #{bottleneck_forward.1} parent=51 // pred_fallthru
              _
          $region52: #{bottleneck_forward.1} parent=47 // pred_fallthru
            _
          %341 = vnop
        $region48: #{bottleneck_forward.1} parent=43 // pred_fallthru
          _
      $region44: #{bottleneck_forward.1} parent=5 // pred_fallthru
        _
      %p342 = scmp.le.s32.totalorder 1, %s14
      %p343 = scmp.lt.s32.totalorder %s14, 3
      %p344 = pnand %p342, %p343
      %p345 = pneg %p344
      // Predicated region
      $region68: #{bottleneck_forward.1} parent=5 // pred_check
        _
      $region69: #{bottleneck_forward.1} parent=5 // pred_check_branch
        %347 = sbr.rel (%p344) target = $region71
      $region70: #{bottleneck_forward.1} parent=5 // pred_region
        %s348 = ssub.s32 %s14, 1
        %s349 = sand.u32 %s27, 1
        %s350 = sand.u32 %s27, 1
        %s351 = smul.addr %s350, 256
        %s352 = scalar_lea.vmem [#allocation3], %s351
        // Predicated region
        $region72: #{bottleneck_forward.1} parent=70 // pred_check
          %p353 = pneg %p40
        $region73: #{bottleneck_forward.1} parent=70 // pred_check_branch
          %355 = sbr.rel (%p353) target = $region75
        $region74: #{bottleneck_forward.1} parent=70 // pred_region
          _
        $region75: #{bottleneck_forward.1} parent=70 // pred_fallthru
          _
        %s356 = sand.u32 %s27, 1
        %s357 = sand.u32 %s27, 1
        %s358 = smul.addr %s357, 256
        %s359 = scalar_lea.vmem [#allocation3], %s358
        %p360 = pneg %p40
        %p361 = pneg %p37
        %p362 = pneg %p61
        %p363 = pneg %p58
        %p364 = pneg %p82
        %p365 = pneg %p79
        %p366 = pneg %p103
        %p367 = pneg %p100
        %p368 = pneg %p124
        %p369 = pneg %p121
        %p370 = pneg %p145
        %p371 = pneg %p142
        %p372 = pneg %p166
        %p373 = pneg %p163
        %p374 = pneg %p187
        %p375 = pneg %p184
        %p376 = pneg %p213
        %p377 = pneg %p210
        %s378 = sand.u32 %s200, 1
        %s379 = sand.u32 %s200, 1
        %s380 = smul.addr %s379, 256
        %s381 = scalar_lea.vmem [#allocation4], %s380
        %s382 = smul.u32 4, %s19
        %s383 = smul.u32 4, %s19
        %v384 = vld [vmem:[%s352] sm:$0xff]
        %v385 = vld [vmem:[%s352 + $0x8] sm:$0xff]
        %v386 = vld [vmem:[%s352 + $0x10] sm:$0xff]
        %v387 = vld [vmem:[%s352 + $0x18] sm:$0xff]
        %v388 = vld [vmem:[%s352 + $0x20] sm:$0xff]
        %v389 = vld [vmem:[%s352 + $0x28] sm:$0xff]
        %v390 = vld [vmem:[%s352 + $0x30] sm:$0xff]
        %v391 = vld [vmem:[%s352 + $0x38] sm:$0xff]
        %v392 = vld [vmem:[%s352 + $0x40] sm:$0xff]
        %v393 = vld [vmem:[%s352 + $0x48] sm:$0xff]
        %v394 = vld [vmem:[%s352 + $0x50] sm:$0xff]
        %v395 = vld [vmem:[%s352 + $0x58] sm:$0xff]
        %v396 = vld [vmem:[%s352 + $0x60] sm:$0xff]
        %v397 = vld [vmem:[%s352 + $0x68] sm:$0xff]
        %v398 = vld [vmem:[%s352 + $0x70] sm:$0xff]
        %v399 = vld [vmem:[%s352 + $0x78] sm:$0xff]
        %v400 = vld [vmem:[%s352 + $0x80] sm:$0xff]
        %v401 = vld [vmem:[%s352 + $0x88] sm:$0xff]
        %v402 = vld [vmem:[%s352 + $0x90] sm:$0xff]
        %v403 = vld [vmem:[%s352 + $0x98] sm:$0xff]
        %v404 = vld [vmem:[%s352 + $0xa0] sm:$0xff]
        %v405 = vld [vmem:[%s352 + $0xa8] sm:$0xff]
        %v406 = vld [vmem:[%s352 + $0xb0] sm:$0xff]
        %v407 = vld [vmem:[%s352 + $0xb8] sm:$0xff]
        %v408 = vld [vmem:[%s352 + $0xc0] sm:$0xff]
        %v409 = vld [vmem:[%s352 + $0xc8] sm:$0xff]
        %v410 = vld [vmem:[%s352 + $0xd0] sm:$0xff]
        %v411 = vld [vmem:[%s352 + $0xd8] sm:$0xff]
        %v412 = vld [vmem:[%s352 + $0xe0] sm:$0xff]
        %v413 = vld [vmem:[%s352 + $0xe8] sm:$0xff]
        %v414 = vld [vmem:[%s352 + $0xf0] sm:$0xff]
        %v415 = vld [vmem:[%s352 + $0xf8] sm:$0xff]
        %v416 = vld [vmem:[%s2] sm:$0xff]
        %v417 = vld [vmem:[%s2 + $0x8] sm:$0xff]
        %v418 = vld [vmem:[%s3] sm:$0xff]
        %v419 = vld [vmem:[%s3 + $0x8] sm:$0xff]
        %421 = vset.pattern.permute.xlu0 0
        %422 = vperm.xlu0 %421, %v418
        %v423 = vpop.permute.xlu0 %422
        %426 = vset.pattern.permute.xlu0 0
        %427 = vperm.xlu0 %426, %v419
        %v428 = vpop.permute.xlu0 %427
        %vm430 = vcmask 523264
        %v432 = vsel %vm430, %v416, 0
        %v435 = vsel %vm430, %v417, 0
        %437 = vmatprep.subr.mxu0 %v385
        %438 = vmatpush1.msra.mxu0 %v384
        %439 = vmatprep.subr.mxu0 %v389
        %440 = vmatpush1.msra.mxu0 %v388
        %441 = vmatprep.subr.mxu0 %v393
        %442 = vmatpush1.msra.mxu0 %v392
        %443 = vmatprep.subr.mxu0 %v397
        %444 = vmatpush1.msra.mxu0 %v396
        %445 = vmatprep.subr.mxu0 %v401
        %446 = vmatpush1.msra.mxu0 %v400
        %447 = vmatprep.subr.mxu0 %v405
        %448 = vmatpush1.msra.mxu0 %v404
        %449 = vmatprep.subr.mxu0 %v409
        %450 = vmatpush1.msra.mxu0 %v408
        %451 = vmatprep.subr.mxu0 %v413
        %452 = vmatpush1.msra.mxu0 %v412
        %453 = vmatprep.subr.mxu0 0.0
        %454 = vmatpush1.msra.mxu0 0.0
        %455 = vmatprep.subr.mxu0 0.0
        %456 = vmatpush1.msra.mxu0 0.0
        %457 = vmatprep.subr.mxu0 0.0
        %458 = vmatpush1.msra.mxu0 0.0
        %459 = vmatprep.subr.mxu0 0.0
        %460 = vmatpush1.msra.mxu0 0.0
        %461 = vmatprep.subr.mxu0 0.0
        %462 = vmatpush1.msra.mxu0 0.0
        %463 = vmatprep.subr.mxu0 0.0
        %464 = vmatpush1.msra.mxu0 0.0
        %465 = vmatprep.subr.mxu0 0.0
        %466 = vmatpush1.msra.mxu0 0.0
        %467 = vmatprep.subr.mxu0 0.0
        %468 = vmatpush1.msra.mxu0 0.0
        %469 = vmatprep.subr.mxu0 0.0
        %470 = vmatpush1.msra.mxu0 0.0
        %471 = vmatprep.subr.mxu0 0.0
        %472 = vmatpush1.msra.mxu0 0.0
        %473 = vmatprep.subr.mxu0 0.0
        %474 = vmatpush1.msra.mxu0 0.0
        %475 = vmatprep.subr.mxu0 0.0
        %476 = vmatpush1.msra.mxu0 0.0
        %477 = vmatprep.subr.mxu0 0.0
        %478 = vmatpush1.msra.mxu0 0.0
        %479 = vmatprep.subr.mxu0 0.0
        %480 = vmatpush1.msra.mxu0 0.0
        %481 = vmatprep.subr.mxu0 0.0
        %482 = vmatpush1.msra.mxu0 0.0
        %483 = vmatprep.subr.mxu0 0.0
        %484 = vmatpush1.msra.mxu0 0.0
        %485 = vmatprep.subr.mxu0 0.0
        %486 = vmatpush1.msra.mxu0 0.0
        %487 = vmatprep.subr.mxu0 0.0
        %488 = vmatpush1.msra.mxu0 0.0
        %489 = vmatprep.subr.mxu0 0.0
        %490 = vmatpush1.msra.mxu0 0.0
        %491 = vmatprep.subr.mxu0 0.0
        %492 = vmatpush1.msra.mxu0 0.0
        %493 = vmatprep.subr.mxu0 0.0
        %494 = vmatpush1.msra.mxu0 0.0
        %495 = vmatprep.subr.mxu0 0.0
        %496 = vmatpush1.msra.mxu0 0.0
        %497 = vmatprep.subr.mxu0 0.0
        %498 = vmatpush1.msra.mxu0 0.0
        %499 = vmatprep.subr.mxu0 0.0
        %500 = vmatpush1.msra.mxu0 0.0
        %501 = vmatprep.mubr.f32.mxu0 0.0
        %502 = vmatmul.mubr.f32.gmra.mrb[0].mxu0 %v432
        %v503 = vpop.f32.mrb[0].mxu0
        %v504 = vadd.f32 %v423, %v503
        %v505 = vpop.f32.mrb[0].mxu0
        %v506 = vadd.f32 %v423, %v505
        %507 = vmatprep.mubr.f32.mxu0 0.0
        %508 = vmatmul.mubr.f32.gmra.mrb[0].mxu0 %v435
        %v509 = vpop.f32.mrb[0].mxu0
        %v510 = vadd.f32 %v428, %v509
        %v511 = vpop.f32.mrb[0].mxu0
        %v512 = vadd.f32 %v428, %v511
        %513 = vdwg.mxu0
        %514 = vmatprep.subr.mxu0 %v387
        %515 = vmatpush1.msra.mxu0 %v386
        %516 = vmatprep.subr.mxu0 %v391
        %517 = vmatpush1.msra.mxu0 %v390
        %518 = vmatprep.subr.mxu0 %v395
        %519 = vmatpush1.msra.mxu0 %v394
        %520 = vmatprep.subr.mxu0 %v399
        %521 = vmatpush1.msra.mxu0 %v398
        %522 = vmatprep.subr.mxu0 %v403
        %523 = vmatpush1.msra.mxu0 %v402
        %524 = vmatprep.subr.mxu0 %v407
        %525 = vmatpush1.msra.mxu0 %v406
        %526 = vmatprep.subr.mxu0 %v411
        %527 = vmatpush1.msra.mxu0 %v410
        %528 = vmatprep.subr.mxu0 %v415
        %529 = vmatpush1.msra.mxu0 %v414
        %530 = vmatprep.subr.mxu0 0.0
        %531 = vmatpush1.msra.mxu0 0.0
        %532 = vmatprep.subr.mxu0 0.0
        %533 = vmatpush1.msra.mxu0 0.0
        %534 = vmatprep.subr.mxu0 0.0
        %535 = vmatpush1.msra.mxu0 0.0
        %536 = vmatprep.subr.mxu0 0.0
        %537 = vmatpush1.msra.mxu0 0.0
        %538 = vmatprep.subr.mxu0 0.0
        %539 = vmatpush1.msra.mxu0 0.0
        %540 = vmatprep.subr.mxu0 0.0
        %541 = vmatpush1.msra.mxu0 0.0
        %542 = vmatprep.subr.mxu0 0.0
        %543 = vmatpush1.msra.mxu0 0.0
        %544 = vmatprep.subr.mxu0 0.0
        %545 = vmatpush1.msra.mxu0 0.0
        %546 = vmatprep.subr.mxu0 0.0
        %547 = vmatpush1.msra.mxu0 0.0
        %548 = vmatprep.subr.mxu0 0.0
        %549 = vmatpush1.msra.mxu0 0.0
        %550 = vmatprep.subr.mxu0 0.0
        %551 = vmatpush1.msra.mxu0 0.0
        %552 = vmatprep.subr.mxu0 0.0
        %553 = vmatpush1.msra.mxu0 0.0
        %554 = vmatprep.subr.mxu0 0.0
        %555 = vmatpush1.msra.mxu0 0.0
        %556 = vmatprep.subr.mxu0 0.0
        %557 = vmatpush1.msra.mxu0 0.0
        %558 = vmatprep.subr.mxu0 0.0
        %559 = vmatpush1.msra.mxu0 0.0
        %560 = vmatprep.subr.mxu0 0.0
        %561 = vmatpush1.msra.mxu0 0.0
        %562 = vmatprep.subr.mxu0 0.0
        %563 = vmatpush1.msra.mxu0 0.0
        %564 = vmatprep.subr.mxu0 0.0
        %565 = vmatpush1.msra.mxu0 0.0
        %566 = vmatprep.subr.mxu0 0.0
        %567 = vmatpush1.msra.mxu0 0.0
        %568 = vmatprep.subr.mxu0 0.0
        %569 = vmatpush1.msra.mxu0 0.0
        %570 = vmatprep.subr.mxu0 0.0
        %571 = vmatpush1.msra.mxu0 0.0
        %572 = vmatprep.subr.mxu0 0.0
        %573 = vmatpush1.msra.mxu0 0.0
        %574 = vmatprep.subr.mxu0 0.0
        %575 = vmatpush1.msra.mxu0 0.0
        %576 = vmatprep.subr.mxu0 0.0
        %577 = vmatpush1.msra.mxu0 0.0
        %578 = vmatprep.mubr.f32.mxu0 0.0
        %579 = vmatmul.mubr.f32.gmra.mrb[0].mxu0 %v432
        %v580 = vpop.f32.mrb[0].mxu0
        %v581 = vadd.f32 %v423, %v580
        %v582 = vpop.f32.mrb[0].mxu0
        %v583 = vadd.f32 %v423, %v582
        %584 = vmatprep.mubr.f32.mxu0 0.0
        %585 = vmatmul.mubr.f32.gmra.mrb[0].mxu0 %v435
        %v586 = vpop.f32.mrb[0].mxu0
        %v587 = vadd.f32 %v428, %v586
        %v588 = vpop.f32.mrb[0].mxu0
        %v589 = vadd.f32 %v428, %v588
        %590 = vdwg.mxu0
        %vm591 = vcmp.ge.f32.partialorder %v504, 0.0
        %vm592 = vcmp.ge.f32.partialorder %v506, 0.0
        %vm593 = vcmp.ge.f32.partialorder %v581, 0.0
        %vm594 = vcmp.ge.f32.partialorder %v583, 0.0
        %vm595 = vcmp.ge.f32.partialorder %v510, 0.0
        %vm596 = vcmp.ge.f32.partialorder %v512, 0.0
        %vm597 = vcmp.ge.f32.partialorder %v587, 0.0
        %vm598 = vcmp.ge.f32.partialorder %v589, 0.0
        %v599 = vmul.f32 %v504, 0.01
        %v600 = vmul.f32 %v506, 0.01
        %v601 = vmul.f32 %v581, 0.01
        %v602 = vmul.f32 %v583, 0.01
        %v603 = vmul.f32 %v510, 0.01
        %v604 = vmul.f32 %v512, 0.01
        %v605 = vmul.f32 %v587, 0.01
        %v606 = vmul.f32 %v589, 0.01
        %v607 = vsel %vm591, %v504, %v599
        %v608 = vsel %vm592, %v506, %v600
        %v609 = vsel %vm593, %v581, %v601
        %v610 = vsel %vm594, %v583, %v602
        %v611 = vsel %vm595, %v510, %v603
        %v612 = vsel %vm596, %v512, %v604
        %v613 = vsel %vm597, %v587, %v605
        %v614 = vsel %vm598, %v589, %v606
        %v615 = vld [vmem:[%s1] sm:$0xff]
        %v616 = vld [vmem:[%s1 + $0x8] sm:$0xff]
        %v617 = vld [vmem:[%s1 + $0x10] sm:$0xff]
        %v618 = vld [vmem:[%s1 + $0x18] sm:$0xff]
        %619 = vrot.lane.b32.xlu0 %v607, 17
        %v620 = vpop.permute.xlu0 %619
        %621 = vrot.lane.b32.xlu0 %v611, 17
        %v622 = vpop.permute.xlu0 %621
        %623 = vrot.lane.b32.xlu0 %v608, 17
        %v624 = vpop.permute.xlu0 %623
        %625 = vrot.lane.b32.xlu0 %v612, 17
        %v626 = vpop.permute.xlu0 %625
        %627 = vrot.lane.b32.xlu0 %v609, 17
        %v628 = vpop.permute.xlu0 %627
        %629 = vrot.lane.b32.xlu0 %v613, 17
        %v630 = vpop.permute.xlu0 %629
        %631 = vrot.lane.b32.xlu0 %v610, 17
        %v632 = vpop.permute.xlu0 %631
        %633 = vrot.lane.b32.xlu0 %v614, 17
        %v634 = vpop.permute.xlu0 %633
        %v635 = vlaneseq
        %v636 = vand.u32 %v635, 127
        %vm637 = vcmp.lt.s32.totalorder %v636, 17
        %v638 = vsel %vm637, %v628, %v632
        %v639 = vsel %vm637, %v630, %v634
        %v640 = vsel %vm637, %v624, %v628
        %v641 = vsel %vm637, %v626, %v630
        %v642 = vsel %vm637, %v620, %v624
        %v643 = vsel %vm637, %v622, %v626
        %v644 = vsel %vm637, %v632, %v620
        %v645 = vsel %vm637, %v634, %v622
        %v646 = vlaneseq
        %v647 = vshrl.u32 %v646, 7
        %v648 = vsub.s32 0, %v647
        %v649 = vrot.slane %v615, %v648
        %v650 = vlaneseq
        %v651 = vshrl.u32 %v650, 7
        %v652 = vsub.s32 0, %v651
        %v653 = vrot.slane %v616, %v652
        %v654 = vlaneseq
        %v655 = vshrl.u32 %v654, 7
        %v656 = vsub.s32 0, %v655
        %v657 = vrot.slane %v617, %v656
        %v658 = vlaneseq
        %v659 = vshrl.u32 %v658, 7
        %v660 = vsub.s32 0, %v659
        %v661 = vrot.slane %v618, %v660
        %v662 = vmul.f32 %v644, %v649
        %v663 = vmul.f32 %v642, %v653
        %v664 = vmul.f32 %v640, %v657
        %v665 = vmul.f32 %v638, %v661
        %v666 = vmul.f32 %v645, %v649
        %v667 = vmul.f32 %v643, %v653
        %v668 = vmul.f32 %v641, %v657
        %v669 = vmul.f32 %v639, %v661
        %670 = vst [vmem:[#allocation2] sm:$0xff] %v662
        %671 = vst [vmem:[#allocation2 + $0x8] sm:$0xff] %v663
        %672 = vst [vmem:[#allocation2 + $0x10] sm:$0xff] %v664
        %673 = vst [vmem:[#allocation2 + $0x18] sm:$0xff] %v665
        %674 = vst [vmem:[#allocation2 + $0x20] sm:$0xff] %v666
        %675 = vst [vmem:[#allocation2 + $0x28] sm:$0xff] %v667
        %676 = vst [vmem:[#allocation2 + $0x30] sm:$0xff] %v668
        %677 = vst [vmem:[#allocation2 + $0x38] sm:$0xff] %v669
        %678 = vrot.lane.b32.xlu0 %v607, 16
        %v679 = vpop.permute.xlu0 %678
        %680 = vrot.lane.b32.xlu0 %v611, 16
        %v681 = vpop.permute.xlu0 %680
        %682 = vrot.lane.b32.xlu0 %v608, 16
        %v683 = vpop.permute.xlu0 %682
        %684 = vrot.lane.b32.xlu0 %v612, 16
        %v685 = vpop.permute.xlu0 %684
        %686 = vrot.lane.b32.xlu0 %v609, 16
        %v687 = vpop.permute.xlu0 %686
        %688 = vrot.lane.b32.xlu0 %v613, 16
        %v689 = vpop.permute.xlu0 %688
        %690 = vrot.lane.b32.xlu0 %v610, 16
        %v691 = vpop.permute.xlu0 %690
        %692 = vrot.lane.b32.xlu0 %v614, 16
        %v693 = vpop.permute.xlu0 %692
        %vm694 = vcmp.lt.s32.totalorder %v636, 16
        %v695 = vsel %vm694, %v687, %v691
        %v696 = vsel %vm694, %v689, %v693
        %v697 = vsel %vm694, %v683, %v687
        %v698 = vsel %vm694, %v685, %v689
        %v699 = vsel %vm694, %v679, %v683
        %v700 = vsel %vm694, %v681, %v685
        %v701 = vsel %vm694, %v691, %v679
        %v702 = vsel %vm694, %v693, %v681
        %v703 = vlaneseq
        %v704 = vshrl.u32 %v703, 7
        %v705 = vsub.s32 1, %v704
        %v706 = vrot.slane %v615, %v705
        %v707 = vlaneseq
        %v708 = vshrl.u32 %v707, 7
        %v709 = vsub.s32 1, %v708
        %v710 = vrot.slane %v616, %v709
        %v711 = vlaneseq
        %v712 = vshrl.u32 %v711, 7
        %v713 = vsub.s32 1, %v712
        %v714 = vrot.slane %v617, %v713
        %v715 = vlaneseq
        %v716 = vshrl.u32 %v715, 7
        %v717 = vsub.s32 1, %v716
        %v718 = vrot.slane %v618, %v717
        %v719 = vmul.f32 %v701, %v706
        %v720 = vmul.f32 %v699, %v710
        %v721 = vmul.f32 %v697, %v714
        %v722 = vmul.f32 %v695, %v718
        %v723 = vmul.f32 %v702, %v706
        %v724 = vmul.f32 %v700, %v710
        %v725 = vmul.f32 %v698, %v714
        %v726 = vmul.f32 %v696, %v718
        %727 = vst [vmem:[#allocation2 + $0x40] sm:$0xff] %v719
        %728 = vst [vmem:[#allocation2 + $0x48] sm:$0xff] %v720
        %729 = vst [vmem:[#allocation2 + $0x50] sm:$0xff] %v721
        %730 = vst [vmem:[#allocation2 + $0x58] sm:$0xff] %v722
        %731 = vst [vmem:[#allocation2 + $0x60] sm:$0xff] %v723
        %732 = vst [vmem:[#allocation2 + $0x68] sm:$0xff] %v724
        %733 = vst [vmem:[#allocation2 + $0x70] sm:$0xff] %v725
        %734 = vst [vmem:[#allocation2 + $0x78] sm:$0xff] %v726
        %735 = vrot.lane.b32.xlu0 %v607, 15
        %v736 = vpop.permute.xlu0 %735
        %737 = vrot.lane.b32.xlu0 %v611, 15
        %v738 = vpop.permute.xlu0 %737
        %739 = vrot.lane.b32.xlu0 %v608, 15
        %v740 = vpop.permute.xlu0 %739
        %741 = vrot.lane.b32.xlu0 %v612, 15
        %v742 = vpop.permute.xlu0 %741
        %743 = vrot.lane.b32.xlu0 %v609, 15
        %v744 = vpop.permute.xlu0 %743
        %745 = vrot.lane.b32.xlu0 %v613, 15
        %v746 = vpop.permute.xlu0 %745
        %747 = vrot.lane.b32.xlu0 %v610, 15
        %v748 = vpop.permute.xlu0 %747
        %749 = vrot.lane.b32.xlu0 %v614, 15
        %v750 = vpop.permute.xlu0 %749
        %vm751 = vcmp.lt.s32.totalorder %v636, 15
        %v752 = vsel %vm751, %v744, %v748
        %v753 = vsel %vm751, %v746, %v750
        %v754 = vsel %vm751, %v740, %v744
        %v755 = vsel %vm751, %v742, %v746
        %v756 = vsel %vm751, %v736, %v740
        %v757 = vsel %vm751, %v738, %v742
        %v758 = vsel %vm751, %v748, %v736
        %v759 = vsel %vm751, %v750, %v738
        %v760 = vlaneseq
        %v761 = vshrl.u32 %v760, 7
        %v762 = vsub.s32 2, %v761
        %v763 = vrot.slane %v615, %v762
        %v764 = vlaneseq
        %v765 = vshrl.u32 %v764, 7
        %v766 = vsub.s32 2, %v765
        %v767 = vrot.slane %v616, %v766
        %v768 = vlaneseq
        %v769 = vshrl.u32 %v768, 7
        %v770 = vsub.s32 2, %v769
        %v771 = vrot.slane %v617, %v770
        %v772 = vlaneseq
        %v773 = vshrl.u32 %v772, 7
        %v774 = vsub.s32 2, %v773
        %v775 = vrot.slane %v618, %v774
        %v776 = vmul.f32 %v758, %v763
        %v777 = vmul.f32 %v756, %v767
        %v778 = vmul.f32 %v754, %v771
        %v779 = vmul.f32 %v752, %v775
        %v780 = vmul.f32 %v759, %v763
        %v781 = vmul.f32 %v757, %v767
        %v782 = vmul.f32 %v755, %v771
        %v783 = vmul.f32 %v753, %v775
        %784 = vst [vmem:[#allocation2 + $0x80] sm:$0xff] %v776
        %785 = vst [vmem:[#allocation2 + $0x88] sm:$0xff] %v777
        %786 = vst [vmem:[#allocation2 + $0x90] sm:$0xff] %v778
        %787 = vst [vmem:[#allocation2 + $0x98] sm:$0xff] %v779
        %788 = vst [vmem:[#allocation2 + $0xa0] sm:$0xff] %v780
        %789 = vst [vmem:[#allocation2 + $0xa8] sm:$0xff] %v781
        %790 = vst [vmem:[#allocation2 + $0xb0] sm:$0xff] %v782
        %791 = vst [vmem:[#allocation2 + $0xb8] sm:$0xff] %v783
        %792 = vrot.lane.b32.xlu0 %v607, 1
        %v793 = vpop.permute.xlu0 %792
        %794 = vrot.lane.b32.xlu0 %v611, 1
        %v795 = vpop.permute.xlu0 %794
        %796 = vrot.lane.b32.xlu0 %v608, 1
        %v797 = vpop.permute.xlu0 %796
        %798 = vrot.lane.b32.xlu0 %v612, 1
        %v799 = vpop.permute.xlu0 %798
        %800 = vrot.lane.b32.xlu0 %v609, 1
        %v801 = vpop.permute.xlu0 %800
        %802 = vrot.lane.b32.xlu0 %v613, 1
        %v803 = vpop.permute.xlu0 %802
        %804 = vrot.lane.b32.xlu0 %v610, 1
        %v805 = vpop.permute.xlu0 %804
        %806 = vrot.lane.b32.xlu0 %v614, 1
        %v807 = vpop.permute.xlu0 %806
        %vm808 = vcmp.lt.s32.totalorder %v636, 1
        %v809 = vsel %vm808, %v801, %v805
        %v810 = vsel %vm808, %v803, %v807
        %v811 = vsel %vm808, %v797, %v801
        %v812 = vsel %vm808, %v799, %v803
        %v813 = vsel %vm808, %v793, %v797
        %v814 = vsel %vm808, %v795, %v799
        %v815 = vsel %vm808, %v805, %v793
        %v816 = vsel %vm808, %v807, %v795
        %v817 = vlaneseq
        %v818 = vshrl.u32 %v817, 7
        %v819 = vsub.s32 3, %v818
        %v820 = vrot.slane %v615, %v819
        %v821 = vlaneseq
        %v822 = vshrl.u32 %v821, 7
        %v823 = vsub.s32 3, %v822
        %v824 = vrot.slane %v616, %v823
        %v825 = vlaneseq
        %v826 = vshrl.u32 %v825, 7
        %v827 = vsub.s32 3, %v826
        %v828 = vrot.slane %v617, %v827
        %v829 = vlaneseq
        %v830 = vshrl.u32 %v829, 7
        %v831 = vsub.s32 3, %v830
        %v832 = vrot.slane %v618, %v831
        %v833 = vmul.f32 %v815, %v820
        %v834 = vmul.f32 %v813, %v824
        %v835 = vmul.f32 %v811, %v828
        %v836 = vmul.f32 %v809, %v832
        %v837 = vmul.f32 %v816, %v820
        %v838 = vmul.f32 %v814, %v824
        %v839 = vmul.f32 %v812, %v828
        %v840 = vmul.f32 %v810, %v832
        %841 = vst [vmem:[#allocation2 + $0xc0] sm:$0xff] %v833
        %842 = vst [vmem:[#allocation2 + $0xc8] sm:$0xff] %v834
        %843 = vst [vmem:[#allocation2 + $0xd0] sm:$0xff] %v835
        %844 = vst [vmem:[#allocation2 + $0xd8] sm:$0xff] %v836
        %845 = vst [vmem:[#allocation2 + $0xe0] sm:$0xff] %v837
        %846 = vst [vmem:[#allocation2 + $0xe8] sm:$0xff] %v838
        %847 = vst [vmem:[#allocation2 + $0xf0] sm:$0xff] %v839
        %848 = vst [vmem:[#allocation2 + $0xf8] sm:$0xff] %v840
        %849 = vst [vmem:[#allocation2 + $0x100] sm:$0xff] %v607
        %850 = vst [vmem:[#allocation2 + $0x108] sm:$0xff] %v608
        %851 = vst [vmem:[#allocation2 + $0x110] sm:$0xff] %v609
        %852 = vst [vmem:[#allocation2 + $0x118] sm:$0xff] %v610
        %853 = vst [vmem:[#allocation2 + $0x120] sm:$0xff] %v611
        %854 = vst [vmem:[#allocation2 + $0x128] sm:$0xff] %v612
        %855 = vst [vmem:[#allocation2 + $0x130] sm:$0xff] %v613
        %856 = vst [vmem:[#allocation2 + $0x138] sm:$0xff] %v614
        %857 = vrot.lane.b32.xlu0 %v607, 127
        %v858 = vpop.permute.xlu0 %857
        %859 = vrot.lane.b32.xlu0 %v611, 127
        %v860 = vpop.permute.xlu0 %859
        %861 = vrot.lane.b32.xlu0 %v608, 127
        %v862 = vpop.permute.xlu0 %861
        %863 = vrot.lane.b32.xlu0 %v612, 127
        %v864 = vpop.permute.xlu0 %863
        %865 = vrot.lane.b32.xlu0 %v609, 127
        %v866 = vpop.permute.xlu0 %865
        %867 = vrot.lane.b32.xlu0 %v613, 127
        %v868 = vpop.permute.xlu0 %867
        %869 = vrot.lane.b32.xlu0 %v610, 127
        %v870 = vpop.permute.xlu0 %869
        %871 = vrot.lane.b32.xlu0 %v614, 127
        %v872 = vpop.permute.xlu0 %871
        %vm873 = vcmp.lt.s32.totalorder %v636, 127
        %v874 = vsel %vm873, %v866, %v870
        %v875 = vsel %vm873, %v868, %v872
        %v876 = vsel %vm873, %v862, %v866
        %v877 = vsel %vm873, %v864, %v868
        %v878 = vsel %vm873, %v858, %v862
        %v879 = vsel %vm873, %v860, %v864
        %v880 = vsel %vm873, %v870, %v858
        %v881 = vsel %vm873, %v872, %v860
        %v882 = vlaneseq
        %v883 = vshrl.u32 %v882, 7
        %v884 = vsub.s32 4, %v883
        %v885 = vrot.slane %v615, %v884
        %v886 = vlaneseq
        %v887 = vshrl.u32 %v886, 7
        %v888 = vsub.s32 4, %v887
        %v889 = vrot.slane %v616, %v888
        %v890 = vlaneseq
        %v891 = vshrl.u32 %v890, 7
        %v892 = vsub.s32 4, %v891
        %v893 = vrot.slane %v617, %v892
        %v894 = vlaneseq
        %v895 = vshrl.u32 %v894, 7
        %v896 = vsub.s32 4, %v895
        %v897 = vrot.slane %v618, %v896
        %v898 = vmul.f32 %v878, %v885
        %v899 = vmul.f32 %v876, %v889
        %v900 = vmul.f32 %v874, %v893
        %v901 = vmul.f32 %v880, %v897
        %v902 = vmul.f32 %v879, %v885
        %v903 = vmul.f32 %v877, %v889
        %v904 = vmul.f32 %v875, %v893
        %v905 = vmul.f32 %v881, %v897
        %906 = vst [vmem:[#allocation2 + $0x140] sm:$0xff] %v898
        %907 = vst [vmem:[#allocation2 + $0x148] sm:$0xff] %v899
        %908 = vst [vmem:[#allocation2 + $0x150] sm:$0xff] %v900
        %909 = vst [vmem:[#allocation2 + $0x158] sm:$0xff] %v901
        %910 = vst [vmem:[#allocation2 + $0x160] sm:$0xff] %v902
        %911 = vst [vmem:[#allocation2 + $0x168] sm:$0xff] %v903
        %912 = vst [vmem:[#allocation2 + $0x170] sm:$0xff] %v904
        %913 = vst [vmem:[#allocation2 + $0x178] sm:$0xff] %v905
        %914 = vrot.lane.b32.xlu0 %v607, 113
        %v915 = vpop.permute.xlu0 %914
        %916 = vrot.lane.b32.xlu0 %v611, 113
        %v917 = vpop.permute.xlu0 %916
        %918 = vrot.lane.b32.xlu0 %v608, 113
        %v919 = vpop.permute.xlu0 %918
        %920 = vrot.lane.b32.xlu0 %v612, 113
        %v921 = vpop.permute.xlu0 %920
        %922 = vrot.lane.b32.xlu0 %v609, 113
        %v923 = vpop.permute.xlu0 %922
        %924 = vrot.lane.b32.xlu0 %v613, 113
        %v925 = vpop.permute.xlu0 %924
        %926 = vrot.lane.b32.xlu0 %v610, 113
        %v927 = vpop.permute.xlu0 %926
        %928 = vrot.lane.b32.xlu0 %v614, 113
        %v929 = vpop.permute.xlu0 %928
        %vm930 = vcmp.lt.s32.totalorder %v636, 113
        %v931 = vsel %vm930, %v923, %v927
        %v932 = vsel %vm930, %v925, %v929
        %v933 = vsel %vm930, %v919, %v923
        %v934 = vsel %vm930, %v921, %v925
        %v935 = vsel %vm930, %v915, %v919
        %v936 = vsel %vm930, %v917, %v921
        %v937 = vsel %vm930, %v927, %v915
        %v938 = vsel %vm930, %v929, %v917
        %v939 = vlaneseq
        %v940 = vshrl.u32 %v939, 7
        %v941 = vsub.s32 5, %v940
        %v942 = vrot.slane %v615, %v941
        %v943 = vlaneseq
        %v944 = vshrl.u32 %v943, 7
        %v945 = vsub.s32 5, %v944
        %v946 = vrot.slane %v616, %v945
        %v947 = vlaneseq
        %v948 = vshrl.u32 %v947, 7
        %v949 = vsub.s32 5, %v948
        %v950 = vrot.slane %v617, %v949
        %v951 = vlaneseq
        %v952 = vshrl.u32 %v951, 7
        %v953 = vsub.s32 5, %v952
        %v954 = vrot.slane %v618, %v953
        %v955 = vmul.f32 %v935, %v942
        %v956 = vmul.f32 %v933, %v946
        %v957 = vmul.f32 %v931, %v950
        %v958 = vmul.f32 %v937, %v954
        %v959 = vmul.f32 %v936, %v942
        %v960 = vmul.f32 %v934, %v946
        %v961 = vmul.f32 %v932, %v950
        %v962 = vmul.f32 %v938, %v954
        %963 = vst [vmem:[#allocation2 + $0x180] sm:$0xff] %v955
        %964 = vst [vmem:[#allocation2 + $0x188] sm:$0xff] %v956
        %965 = vst [vmem:[#allocation2 + $0x190] sm:$0xff] %v957
        %966 = vst [vmem:[#allocation2 + $0x198] sm:$0xff] %v958
        %967 = vst [vmem:[#allocation2 + $0x1a0] sm:$0xff] %v959
        %968 = vst [vmem:[#allocation2 + $0x1a8] sm:$0xff] %v960
        %969 = vst [vmem:[#allocation2 + $0x1b0] sm:$0xff] %v961
        %970 = vst [vmem:[#allocation2 + $0x1b8] sm:$0xff] %v962
        %971 = vrot.lane.b32.xlu0 %v607, 112
        %v972 = vpop.permute.xlu0 %971
        %973 = vrot.lane.b32.xlu0 %v611, 112
        %v974 = vpop.permute.xlu0 %973
        %975 = vrot.lane.b32.xlu0 %v608, 112
        %v976 = vpop.permute.xlu0 %975
        %977 = vrot.lane.b32.xlu0 %v612, 112
        %v978 = vpop.permute.xlu0 %977
        %979 = vrot.lane.b32.xlu0 %v609, 112
        %v980 = vpop.permute.xlu0 %979
        %981 = vrot.lane.b32.xlu0 %v613, 112
        %v982 = vpop.permute.xlu0 %981
        %983 = vrot.lane.b32.xlu0 %v610, 112
        %v984 = vpop.permute.xlu0 %983
        %985 = vrot.lane.b32.xlu0 %v614, 112
        %v986 = vpop.permute.xlu0 %985
        %vm987 = vcmp.lt.s32.totalorder %v636, 112
        %v988 = vsel %vm987, %v980, %v984
        %v989 = vsel %vm987, %v982, %v986
        %v990 = vsel %vm987, %v976, %v980
        %v991 = vsel %vm987, %v978, %v982
        %v992 = vsel %vm987, %v972, %v976
        %v993 = vsel %vm987, %v974, %v978
        %v994 = vsel %vm987, %v984, %v972
        %v995 = vsel %vm987, %v986, %v974
        %v996 = vlaneseq
        %v997 = vshrl.u32 %v996, 7
        %v998 = vsub.s32 6, %v997
        %v999 = vrot.slane %v615, %v998
        %v1000 = vlaneseq
        %v1001 = vshrl.u32 %v1000, 7
        %v1002 = vsub.s32 6, %v1001
        %v1003 = vrot.slane %v616, %v1002
        %v1004 = vlaneseq
        %v1005 = vshrl.u32 %v1004, 7
        %v1006 = vsub.s32 6, %v1005
        %v1007 = vrot.slane %v617, %v1006
        %v1008 = vlaneseq
        %v1009 = vshrl.u32 %v1008, 7
        %v1010 = vsub.s32 6, %v1009
        %v1011 = vrot.slane %v618, %v1010
        %v1012 = vmul.f32 %v992, %v999
        %v1013 = vmul.f32 %v990, %v1003
        %v1014 = vmul.f32 %v988, %v1007
        %v1015 = vmul.f32 %v994, %v1011
        %v1016 = vmul.f32 %v993, %v999
        %v1017 = vmul.f32 %v991, %v1003
        %v1018 = vmul.f32 %v989, %v1007
        %v1019 = vmul.f32 %v995, %v1011
        %1020 = vst [vmem:[#allocation2 + $0x1c0] sm:$0xff] %v1012
        %1021 = vst [vmem:[#allocation2 + $0x1c8] sm:$0xff] %v1013
        %1022 = vst [vmem:[#allocation2 + $0x1d0] sm:$0xff] %v1014
        %1023 = vst [vmem:[#allocation2 + $0x1d8] sm:$0xff] %v1015
        %1024 = vst [vmem:[#allocation2 + $0x1e0] sm:$0xff] %v1016
        %1025 = vst [vmem:[#allocation2 + $0x1e8] sm:$0xff] %v1017
        %1026 = vst [vmem:[#allocation2 + $0x1f0] sm:$0xff] %v1018
        %1027 = vst [vmem:[#allocation2 + $0x1f8] sm:$0xff] %v1019
        %1028 = vrot.lane.b32.xlu0 %v607, 111
        %v1029 = vpop.permute.xlu0 %1028
        %1030 = vrot.lane.b32.xlu0 %v611, 111
        %v1031 = vpop.permute.xlu0 %1030
        %1032 = vrot.lane.b32.xlu0 %v608, 111
        %v1033 = vpop.permute.xlu0 %1032
        %1034 = vrot.lane.b32.xlu0 %v612, 111
        %v1035 = vpop.permute.xlu0 %1034
        %1036 = vrot.lane.b32.xlu0 %v609, 111
        %v1037 = vpop.permute.xlu0 %1036
        %1038 = vrot.lane.b32.xlu0 %v613, 111
        %v1039 = vpop.permute.xlu0 %1038
        %1040 = vrot.lane.b32.xlu0 %v610, 111
        %v1041 = vpop.permute.xlu0 %1040
        %1042 = vrot.lane.b32.xlu0 %v614, 111
        %v1043 = vpop.permute.xlu0 %1042
        %vm1044 = vcmp.lt.s32.totalorder %v636, 111
        %v1045 = vsel %vm1044, %v1037, %v1041
        %v1046 = vsel %vm1044, %v1039, %v1043
        %v1047 = vsel %vm1044, %v1033, %v1037
        %v1048 = vsel %vm1044, %v1035, %v1039
        %v1049 = vsel %vm1044, %v1029, %v1033
        %v1050 = vsel %vm1044, %v1031, %v1035
        %v1051 = vsel %vm1044, %v1041, %v1029
        %v1052 = vsel %vm1044, %v1043, %v1031
        %v1053 = vlaneseq
        %v1054 = vshrl.u32 %v1053, 7
        %v1055 = vsub.s32 7, %v1054
        %v1056 = vrot.slane %v615, %v1055
        %v1057 = vlaneseq
        %v1058 = vshrl.u32 %v1057, 7
        %v1059 = vsub.s32 7, %v1058
        %v1060 = vrot.slane %v616, %v1059
        %v1061 = vlaneseq
        %v1062 = vshrl.u32 %v1061, 7
        %v1063 = vsub.s32 7, %v1062
        %v1064 = vrot.slane %v617, %v1063
        %v1065 = vlaneseq
        %v1066 = vshrl.u32 %v1065, 7
        %v1067 = vsub.s32 7, %v1066
        %v1068 = vrot.slane %v618, %v1067
        %v1069 = vmul.f32 %v1049, %v1056
        %v1070 = vmul.f32 %v1047, %v1060
        %v1071 = vmul.f32 %v1045, %v1064
        %v1072 = vmul.f32 %v1051, %v1068
        %v1073 = vmul.f32 %v1050, %v1056
        %v1074 = vmul.f32 %v1048, %v1060
        %v1075 = vmul.f32 %v1046, %v1064
        %v1076 = vmul.f32 %v1052, %v1068
        %1077 = vst [vmem:[#allocation2 + $0x200] sm:$0xff] %v1069
        %1078 = vst [vmem:[#allocation2 + $0x208] sm:$0xff] %v1070
        %1079 = vst [vmem:[#allocation2 + $0x210] sm:$0xff] %v1071
        %1080 = vst [vmem:[#allocation2 + $0x218] sm:$0xff] %v1072
        %1081 = vst [vmem:[#allocation2 + $0x220] sm:$0xff] %v1073
        %1082 = vst [vmem:[#allocation2 + $0x228] sm:$0xff] %v1074
        %1083 = vst [vmem:[#allocation2 + $0x230] sm:$0xff] %v1075
        %1084 = vst [vmem:[#allocation2 + $0x238] sm:$0xff] %v1076
        %v1085 = vld [vmem:[%s4] sm:$0xff]
        %v1086 = vld [vmem:[%s4 + $0x8] sm:$0xff]
        %v1087 = vld [vmem:[%s4 + $0x10] sm:$0xff]
        %v1088 = vld [vmem:[%s4 + $0x18] sm:$0xff]
        %v1089 = vld [vmem:[#allocation2] sm:$0xff]
        %v1090 = vld [vmem:[#allocation2 + $0x8] sm:$0xff]
        %v1091 = vld [vmem:[#allocation2 + $0x10] sm:$0xff]
        %v1092 = vld [vmem:[#allocation2 + $0x18] sm:$0xff]
        %v1093 = vld [vmem:[#allocation2 + $0x20] sm:$0xff]
        %v1094 = vld [vmem:[#allocation2 + $0x28] sm:$0xff]
        %v1095 = vld [vmem:[#allocation2 + $0x30] sm:$0xff]
        %v1096 = vld [vmem:[#allocation2 + $0x38] sm:$0xff]
        %v1097 = vld [vmem:[#allocation2 + $0x40] sm:$0xff]
        %v1098 = vld [vmem:[#allocation2 + $0x48] sm:$0xff]
        %v1099 = vld [vmem:[#allocation2 + $0x50] sm:$0xff]
        %v1100 = vld [vmem:[#allocation2 + $0x58] sm:$0xff]
        %v1101 = vld [vmem:[#allocation2 + $0x60] sm:$0xff]
        %v1102 = vld [vmem:[#allocation2 + $0x68] sm:$0xff]
        %v1103 = vld [vmem:[#allocation2 + $0x70] sm:$0xff]
        %v1104 = vld [vmem:[#allocation2 + $0x78] sm:$0xff]
        %v1105 = vld [vmem:[#allocation2 + $0x80] sm:$0xff]
        %v1106 = vld [vmem:[#allocation2 + $0x88] sm:$0xff]
        %v1107 = vld [vmem:[#allocation2 + $0x90] sm:$0xff]
        %v1108 = vld [vmem:[#allocation2 + $0x98] sm:$0xff]
        %v1109 = vld [vmem:[#allocation2 + $0xa0] sm:$0xff]
        %v1110 = vld [vmem:[#allocation2 + $0xa8] sm:$0xff]
        %v1111 = vld [vmem:[#allocation2 + $0xb0] sm:$0xff]
        %v1112 = vld [vmem:[#allocation2 + $0xb8] sm:$0xff]
        %v1113 = vld [vmem:[#allocation2 + $0xc0] sm:$0xff]
        %v1114 = vld [vmem:[#allocation2 + $0xc8] sm:$0xff]
        %v1115 = vld [vmem:[#allocation2 + $0xd0] sm:$0xff]
        %v1116 = vld [vmem:[#allocation2 + $0xd8] sm:$0xff]
        %v1117 = vld [vmem:[#allocation2 + $0xe0] sm:$0xff]
        %v1118 = vld [vmem:[#allocation2 + $0xe8] sm:$0xff]
        %v1119 = vld [vmem:[#allocation2 + $0xf0] sm:$0xff]
        %v1120 = vld [vmem:[#allocation2 + $0xf8] sm:$0xff]
        %v1121 = vld [vmem:[#allocation2 + $0x100] sm:$0xff]
        %v1122 = vld [vmem:[#allocation2 + $0x108] sm:$0xff]
        %v1123 = vld [vmem:[#allocation2 + $0x110] sm:$0xff]
        %v1124 = vld [vmem:[#allocation2 + $0x118] sm:$0xff]
        %v1125 = vld [vmem:[#allocation2 + $0x120] sm:$0xff]
        %v1126 = vld [vmem:[#allocation2 + $0x128] sm:$0xff]
        %v1127 = vld [vmem:[#allocation2 + $0x130] sm:$0xff]
        %v1128 = vld [vmem:[#allocation2 + $0x138] sm:$0xff]
        %v1129 = vld [vmem:[#allocation2 + $0x140] sm:$0xff]
        %v1130 = vld [vmem:[#allocation2 + $0x148] sm:$0xff]
        %v1131 = vld [vmem:[#allocation2 + $0x150] sm:$0xff]
        %v1132 = vld [vmem:[#allocation2 + $0x158] sm:$0xff]
        %v1133 = vld [vmem:[#allocation2 + $0x160] sm:$0xff]
        %v1134 = vld [vmem:[#allocation2 + $0x168] sm:$0xff]
        %v1135 = vld [vmem:[#allocation2 + $0x170] sm:$0xff]
        %v1136 = vld [vmem:[#allocation2 + $0x178] sm:$0xff]
        %v1137 = vld [vmem:[#allocation2 + $0x180] sm:$0xff]
        %v1138 = vld [vmem:[#allocation2 + $0x188] sm:$0xff]
        %v1139 = vld [vmem:[#allocation2 + $0x190] sm:$0xff]
        %v1140 = vld [vmem:[#allocation2 + $0x198] sm:$0xff]
        %v1141 = vld [vmem:[#allocation2 + $0x1a0] sm:$0xff]
        %v1142 = vld [vmem:[#allocation2 + $0x1a8] sm:$0xff]
        %v1143 = vld [vmem:[#allocation2 + $0x1b0] sm:$0xff]
        %v1144 = vld [vmem:[#allocation2 + $0x1b8] sm:$0xff]
        %v1145 = vld [vmem:[#allocation2 + $0x1c0] sm:$0xff]
        %v1146 = vld [vmem:[#allocation2 + $0x1c8] sm:$0xff]
        %v1147 = vld [vmem:[#allocation2 + $0x1d0] sm:$0xff]
        %v1148 = vld [vmem:[#allocation2 + $0x1d8] sm:$0xff]
        %v1149 = vld [vmem:[#allocation2 + $0x1e0] sm:$0xff]
        %v1150 = vld [vmem:[#allocation2 + $0x1e8] sm:$0xff]
        %v1151 = vld [vmem:[#allocation2 + $0x1f0] sm:$0xff]
        %v1152 = vld [vmem:[#allocation2 + $0x1f8] sm:$0xff]
        %v1153 = vld [vmem:[#allocation2 + $0x200] sm:$0xff]
        %v1154 = vld [vmem:[#allocation2 + $0x208] sm:$0xff]
        %v1155 = vld [vmem:[#allocation2 + $0x210] sm:$0xff]
        %v1156 = vld [vmem:[#allocation2 + $0x218] sm:$0xff]
        %v1157 = vld [vmem:[#allocation2 + $0x220] sm:$0xff]
        %v1158 = vld [vmem:[#allocation2 + $0x228] sm:$0xff]
        %v1159 = vld [vmem:[#allocation2 + $0x230] sm:$0xff]
        %v1160 = vld [vmem:[#allocation2 + $0x238] sm:$0xff]
        %v1161 = vld [vmem:[%s5] sm:$0xff]
        %v1162 = vld [vmem:[%s5 + $0x8] sm:$0xff]
        %1164 = vset.pattern.permute.xlu0 0
        %1165 = vperm.xlu0 %1164, %v1161
        %v1166 = vpop.permute.xlu0 %1165
        %1169 = vset.pattern.permute.xlu0 0
        %1170 = vperm.xlu0 %1169, %v1162
        %v1171 = vpop.permute.xlu0 %1170
        %vm1173 = vcmask 130048
        %v1175 = vsel %vm1173, %v1086, 0
        %v1178 = vsel %vm1173, %v1088, 0
        %1180 = vmatprep.subr.mxu0 %v1090
        %1181 = vmatpush1.msra.mxu0 %v1089
        %1182 = vmatprep.subr.mxu0 %v1094
        %1183 = vmatpush1.msra.mxu0 %v1093
        %1184 = vmatprep.subr.mxu0 %v1098
        %1185 = vmatpush1.msra.mxu0 %v1097
        %1186 = vmatprep.subr.mxu0 %v1102
        %1187 = vmatpush1.msra.mxu0 %v1101
        %1188 = vmatprep.subr.mxu0 %v1106
        %1189 = vmatpush1.msra.mxu0 %v1105
        %1190 = vmatprep.subr.mxu0 %v1110
        %1191 = vmatpush1.msra.mxu0 %v1109
        %1192 = vmatprep.subr.mxu0 %v1114
        %1193 = vmatpush1.msra.mxu0 %v1113
        %1194 = vmatprep.subr.mxu0 %v1118
        %1195 = vmatpush1.msra.mxu0 %v1117
        %1196 = vmatprep.subr.mxu0 %v1122
        %1197 = vmatpush1.msra.mxu0 %v1121
        %1198 = vmatprep.subr.mxu0 %v1126
        %1199 = vmatpush1.msra.mxu0 %v1125
        %1200 = vmatprep.subr.mxu0 %v1130
        %1201 = vmatpush1.msra.mxu0 %v1129
        %1202 = vmatprep.subr.mxu0 %v1134
        %1203 = vmatpush1.msra.mxu0 %v1133
        %1204 = vmatprep.subr.mxu0 %v1138
        %1205 = vmatpush1.msra.mxu0 %v1137
        %1206 = vmatprep.subr.mxu0 %v1142
        %1207 = vmatpush1.msra.mxu0 %v1141
        %1208 = vmatprep.subr.mxu0 %v1146
        %1209 = vmatpush1.msra.mxu0 %v1145
        %1210 = vmatprep.subr.mxu0 %v1150
        %1211 = vmatpush1.msra.mxu0 %v1149
        %1212 = vmatprep.subr.mxu0 %v1154
        %1213 = vmatpush1.msra.mxu0 %v1153
        %1214 = vmatprep.subr.mxu0 %v1158
        %1215 = vmatpush1.msra.mxu0 %v1157
        %1216 = vmatprep.subr.mxu0 0.0
        %1217 = vmatpush1.msra.mxu0 0.0
        %1218 = vmatprep.subr.mxu0 0.0
        %1219 = vmatpush1.msra.mxu0 0.0
        %1220 = vmatprep.subr.mxu0 0.0
        %1221 = vmatpush1.msra.mxu0 0.0
        %1222 = vmatprep.subr.mxu0 0.0
        %1223 = vmatpush1.msra.mxu0 0.0
        %1224 = vmatprep.subr.mxu0 0.0
        %1225 = vmatpush1.msra.mxu0 0.0
        %1226 = vmatprep.subr.mxu0 0.0
        %1227 = vmatpush1.msra.mxu0 0.0
        %1228 = vmatprep.subr.mxu0 0.0
        %1229 = vmatpush1.msra.mxu0 0.0
        %1230 = vmatprep.subr.mxu0 0.0
        %1231 = vmatpush1.msra.mxu0 0.0
        %1232 = vmatprep.subr.mxu0 0.0
        %1233 = vmatpush1.msra.mxu0 0.0
        %1234 = vmatprep.subr.mxu0 0.0
        %1235 = vmatpush1.msra.mxu0 0.0
        %1236 = vmatprep.subr.mxu0 0.0
        %1237 = vmatpush1.msra.mxu0 0.0
        %1238 = vmatprep.subr.mxu0 0.0
        %1239 = vmatpush1.msra.mxu0 0.0
        %1240 = vmatprep.subr.mxu0 0.0
        %1241 = vmatpush1.msra.mxu0 0.0
        %1242 = vmatprep.subr.mxu0 0.0
        %1243 = vmatpush1.msra.mxu0 0.0
        %1244 = vmatprep.mubr.f32.mxu0 %v1175
        %1245 = vmatmul.mubr.f32.gmra.mrb[0].mxu0 %v1085
        %v1246 = vpop.f32.mrb[0].mxu0
        %v1247 = vadd.f32 %v1166, %v1246
        %v1248 = vpop.f32.mrb[0].mxu0
        %v1249 = vadd.f32 %v1166, %v1248
        %1250 = vmatprep.mubr.f32.mxu0 %v1178
        %1251 = vmatmul.mubr.f32.gmra.mrb[0].mxu0 %v1087
        %v1252 = vpop.f32.mrb[0].mxu0
        %v1253 = vadd.f32 %v1171, %v1252
        %v1254 = vpop.f32.mrb[0].mxu0
        %v1255 = vadd.f32 %v1171, %v1254
        %1256 = vdwg.mxu0
        %1257 = vmatprep.subr.mxu0 %v1092
        %1258 = vmatpush1.msra.mxu0 %v1091
        %1259 = vmatprep.subr.mxu0 %v1096
        %1260 = vmatpush1.msra.mxu0 %v1095
        %1261 = vmatprep.subr.mxu0 %v1100
        %1262 = vmatpush1.msra.mxu0 %v1099
        %1263 = vmatprep.subr.mxu0 %v1104
        %1264 = vmatpush1.msra.mxu0 %v1103
        %1265 = vmatprep.subr.mxu0 %v1108
        %1266 = vmatpush1.msra.mxu0 %v1107
        %1267 = vmatprep.subr.mxu0 %v1112
        %1268 = vmatpush1.msra.mxu0 %v1111
        %1269 = vmatprep.subr.mxu0 %v1116
        %1270 = vmatpush1.msra.mxu0 %v1115
        %1271 = vmatprep.subr.mxu0 %v1120
        %1272 = vmatpush1.msra.mxu0 %v1119
        %1273 = vmatprep.subr.mxu0 %v1124
        %1274 = vmatpush1.msra.mxu0 %v1123
        %1275 = vmatprep.subr.mxu0 %v1128
        %1276 = vmatpush1.msra.mxu0 %v1127
        %1277 = vmatprep.subr.mxu0 %v1132
        %1278 = vmatpush1.msra.mxu0 %v1131
        %1279 = vmatprep.subr.mxu0 %v1136
        %1280 = vmatpush1.msra.mxu0 %v1135
        %1281 = vmatprep.subr.mxu0 %v1140
        %1282 = vmatpush1.msra.mxu0 %v1139
        %1283 = vmatprep.subr.mxu0 %v1144
        %1284 = vmatpush1.msra.mxu0 %v1143
        %1285 = vmatprep.subr.mxu0 %v1148
        %1286 = vmatpush1.msra.mxu0 %v1147
        %1287 = vmatprep.subr.mxu0 %v1152
        %1288 = vmatpush1.msra.mxu0 %v1151
        %1289 = vmatprep.subr.mxu0 %v1156
        %1290 = vmatpush1.msra.mxu0 %v1155
        %1291 = vmatprep.subr.mxu0 %v1160
        %1292 = vmatpush1.msra.mxu0 %v1159
        %1293 = vmatprep.subr.mxu0 0.0
        %1294 = vmatpush1.msra.mxu0 0.0
        %1295 = vmatprep.subr.mxu0 0.0
        %1296 = vmatpush1.msra.mxu0 0.0
        %1297 = vmatprep.subr.mxu0 0.0
        %1298 = vmatpush1.msra.mxu0 0.0
        %1299 = vmatprep.subr.mxu0 0.0
        %1300 = vmatpush1.msra.mxu0 0.0
        %1301 = vmatprep.subr.mxu0 0.0
        %1302 = vmatpush1.msra.mxu0 0.0
        %1303 = vmatprep.subr.mxu0 0.0
        %1304 = vmatpush1.msra.mxu0 0.0
        %1305 = vmatprep.subr.mxu0 0.0
        %1306 = vmatpush1.msra.mxu0 0.0
        %1307 = vmatprep.subr.mxu0 0.0
        %1308 = vmatpush1.msra.mxu0 0.0
        %1309 = vmatprep.subr.mxu0 0.0
        %1310 = vmatpush1.msra.mxu0 0.0
        %1311 = vmatprep.subr.mxu0 0.0
        %1312 = vmatpush1.msra.mxu0 0.0
        %1313 = vmatprep.subr.mxu0 0.0
        %1314 = vmatpush1.msra.mxu0 0.0
        %1315 = vmatprep.subr.mxu0 0.0
        %1316 = vmatpush1.msra.mxu0 0.0
        %1317 = vmatprep.subr.mxu0 0.0
        %1318 = vmatpush1.msra.mxu0 0.0
        %1319 = vmatprep.subr.mxu0 0.0
        %1320 = vmatpush1.msra.mxu0 0.0
        %1321 = vmatprep.mubr.f32.mxu0 %v1175
        %1322 = vmatmul.mubr.f32.gmra.mrb[0].mxu0 %v1085
        %v1323 = vpop.f32.mrb[0].mxu0
        %v1324 = vadd.f32 %v1166, %v1323
        %v1325 = vpop.f32.mrb[0].mxu0
        %v1326 = vadd.f32 %v1166, %v1325
        %1327 = vmatprep.mubr.f32.mxu0 %v1178
        %1328 = vmatmul.mubr.f32.gmra.mrb[0].mxu0 %v1087
        %v1329 = vpop.f32.mrb[0].mxu0
        %v1330 = vadd.f32 %v1171, %v1329
        %v1331 = vpop.f32.mrb[0].mxu0
        %v1332 = vadd.f32 %v1171, %v1331
        %1333 = vdwg.mxu0
        %vm1334 = vcmp.ge.f32.partialorder %v1247, 0.0
        %vm1335 = vcmp.ge.f32.partialorder %v1249, 0.0
        %vm1336 = vcmp.ge.f32.partialorder %v1324, 0.0
        %vm1337 = vcmp.ge.f32.partialorder %v1326, 0.0
        %vm1338 = vcmp.ge.f32.partialorder %v1253, 0.0
        %vm1339 = vcmp.ge.f32.partialorder %v1255, 0.0
        %vm1340 = vcmp.ge.f32.partialorder %v1330, 0.0
        %vm1341 = vcmp.ge.f32.partialorder %v1332, 0.0
        %v1342 = vmul.f32 %v1247, 0.01
        %v1343 = vmul.f32 %v1249, 0.01
        %v1344 = vmul.f32 %v1324, 0.01
        %v1345 = vmul.f32 %v1326, 0.01
        %v1346 = vmul.f32 %v1253, 0.01
        %v1347 = vmul.f32 %v1255, 0.01
        %v1348 = vmul.f32 %v1330, 0.01
        %v1349 = vmul.f32 %v1332, 0.01
        %v1350 = vsel %vm1334, %v1247, %v1342
        %v1351 = vsel %vm1335, %v1249, %v1343
        %v1352 = vsel %vm1336, %v1324, %v1344
        %v1353 = vsel %vm1337, %v1326, %v1345
        %v1354 = vsel %vm1338, %v1253, %v1346
        %v1355 = vsel %vm1339, %v1255, %v1347
        %v1356 = vsel %vm1340, %v1330, %v1348
        %v1357 = vsel %vm1341, %v1332, %v1349
        %v1358 = vld [vmem:[%s6] sm:$0xff]
        %v1359 = vld [vmem:[%s6 + $0x8] sm:$0xff]
        %v1360 = vld [vmem:[%s6 + $0x10] sm:$0xff]
        %v1361 = vld [vmem:[%s6 + $0x18] sm:$0xff]
        %v1362 = vld [vmem:[%s6 + $0x20] sm:$0xff]
        %v1363 = vld [vmem:[%s6 + $0x28] sm:$0xff]
        %v1364 = vld [vmem:[%s6 + $0x30] sm:$0xff]
        %v1365 = vld [vmem:[%s6 + $0x38] sm:$0xff]
        %v1366 = vld [vmem:[%s7] sm:$0xff]
        %v1367 = vld [vmem:[%s7 + $0x8] sm:$0xff]
        %v1368 = vld [vmem:[%s7 + $0x10] sm:$0xff]
        %v1369 = vld [vmem:[%s7 + $0x18] sm:$0xff]
        %v1370 = vld [vmem:[%s7 + $0x20] sm:$0xff]
        %v1371 = vld [vmem:[%s7 + $0x28] sm:$0xff]
        %v1372 = vld [vmem:[%s7 + $0x30] sm:$0xff]
        %v1373 = vld [vmem:[%s7 + $0x38] sm:$0xff]
        %1375 = vset.pattern.permute.xlu0 0
        %1376 = vperm.xlu0 %1375, %v1366
        %v1377 = vpop.permute.xlu0 %1376
        %1380 = vset.pattern.permute.xlu0 0
        %1381 = vperm.xlu0 %1380, %v1367
        %v1382 = vpop.permute.xlu0 %1381
        %1385 = vset.pattern.permute.xlu0 0
        %1386 = vperm.xlu0 %1385, %v1368
        %v1387 = vpop.permute.xlu0 %1386
        %1390 = vset.pattern.permute.xlu0 0
        %1391 = vperm.xlu0 %1390, %v1369
        %v1392 = vpop.permute.xlu0 %1391
        %1395 = vset.pattern.permute.xlu0 0
        %1396 = vperm.xlu0 %1395, %v1370
        %v1397 = vpop.permute.xlu0 %1396
        %1400 = vset.pattern.permute.xlu0 0
        %1401 = vperm.xlu0 %1400, %v1371
        %v1402 = vpop.permute.xlu0 %1401
        %1405 = vset.pattern.permute.xlu0 0
        %1406 = vperm.xlu0 %1405, %v1372
        %v1407 = vpop.permute.xlu0 %1406
        %1410 = vset.pattern.permute.xlu0 0
        %1411 = vperm.xlu0 %1410, %v1373
        %v1412 = vpop.permute.xlu0 %1411
        %v1415 = vsel %vm1173, %v1358, 0
        %v1418 = vsel %vm1173, %v1359, 0
        %v1421 = vsel %vm1173, %v1360, 0
        %v1424 = vsel %vm1173, %v1361, 0
        %v1427 = vsel %vm1173, %v1362, 0
        %v1430 = vsel %vm1173, %v1363, 0
        %v1433 = vsel %vm1173, %v1364, 0
        %v1436 = vsel %vm1173, %v1365, 0
        %1438 = vmatprep.subr.mxu0 %v1351
        %1439 = vmatpush1.msra.mxu0 %v1350
        %1440 = vmatprep.subr.mxu0 %v1355
        %1441 = vmatpush1.msra.mxu0 %v1354
        %1442 = vmatprep.subr.mxu0 0.0
        %1443 = vmatpush1.msra.mxu0 0.0
        %1444 = vmatprep.subr.mxu0 0.0
        %1445 = vmatpush1.msra.mxu0 0.0
        %1446 = vmatprep.subr.mxu0 0.0
        %1447 = vmatpush1.msra.mxu0 0.0
        %1448 = vmatprep.subr.mxu0 0.0
        %1449 = vmatpush1.msra.mxu0 0.0
        %1450 = vmatprep.subr.mxu0 0.0
        %1451 = vmatpush1.msra.mxu0 0.0
        %1452 = vmatprep.subr.mxu0 0.0
        %1453 = vmatpush1.msra.mxu0 0.0
        %1454 = vmatprep.subr.mxu0 0.0
        %1455 = vmatpush1.msra.mxu0 0.0
        %1456 = vmatprep.subr.mxu0 0.0
        %1457 = vmatpush1.msra.mxu0 0.0
        %1458 = vmatprep.subr.mxu0 0.0
        %1459 = vmatpush1.msra.mxu0 0.0
        %1460 = vmatprep.subr.mxu0 0.0
        %1461 = vmatpush1.msra.mxu0 0.0
        %1462 = vmatprep.subr.mxu0 0.0
        %1463 = vmatpush1.msra.mxu0 0.0
        %1464 = vmatprep.subr.mxu0 0.0
        %1465 = vmatpush1.msra.mxu0 0.0
        %1466 = vmatprep.subr.mxu0 0.0
        %1467 = vmatpush1.msra.mxu0 0.0
        %1468 = vmatprep.subr.mxu0 0.0
        %1469 = vmatpush1.msra.mxu0 0.0
        %1470 = vmatprep.subr.mxu0 0.0
        %1471 = vmatpush1.msra.mxu0 0.0
        %1472 = vmatprep.subr.mxu0 0.0
        %1473 = vmatpush1.msra.mxu0 0.0
        %1474 = vmatprep.subr.mxu0 0.0
        %1475 = vmatpush1.msra.mxu0 0.0
        %1476 = vmatprep.subr.mxu0 0.0
        %1477 = vmatpush1.msra.mxu0 0.0
        %1478 = vmatprep.subr.mxu0 0.0
        %1479 = vmatpush1.msra.mxu0 0.0
        %1480 = vmatprep.subr.mxu0 0.0
        %1481 = vmatpush1.msra.mxu0 0.0
        %1482 = vmatprep.subr.mxu0 0.0
        %1483 = vmatpush1.msra.mxu0 0.0
        %1484 = vmatprep.subr.mxu0 0.0
        %1485 = vmatpush1.msra.mxu0 0.0
        %1486 = vmatprep.subr.mxu0 0.0
        %1487 = vmatpush1.msra.mxu0 0.0
        %1488 = vmatprep.subr.mxu0 0.0
        %1489 = vmatpush1.msra.mxu0 0.0
        %1490 = vmatprep.subr.mxu0 0.0
        %1491 = vmatpush1.msra.mxu0 0.0
        %1492 = vmatprep.subr.mxu0 0.0
        %1493 = vmatpush1.msra.mxu0 0.0
        %1494 = vmatprep.subr.mxu0 0.0
        %1495 = vmatpush1.msra.mxu0 0.0
        %1496 = vmatprep.subr.mxu0 0.0
        %1497 = vmatpush1.msra.mxu0 0.0
        %1498 = vmatprep.subr.mxu0 0.0
        %1499 = vmatpush1.msra.mxu0 0.0
        %1500 = vmatprep.subr.mxu0 0.0
        %1501 = vmatpush1.msra.mxu0 0.0
        %1502 = vmatprep.mubr.f32.mxu0 0.0
        %1503 = vmatmul.mubr.f32.gmra.mrb[0].mxu0 %v1415
        %v1504 = vpop.f32.mrb[0].mxu0
        %v1505 = vadd.f32 %v1377, %v1504
        %v1506 = vpop.f32.mrb[0].mxu0
        %v1507 = vadd.f32 %v1377, %v1506
        %1508 = vmatprep.mubr.f32.mxu0 0.0
        %1509 = vmatmul.mubr.f32.gmra.mrb[0].mxu0 %v1418
        %v1510 = vpop.f32.mrb[0].mxu0
        %v1511 = vadd.f32 %v1382, %v1510
        %v1512 = vpop.f32.mrb[0].mxu0
        %v1513 = vadd.f32 %v1382, %v1512
        %1514 = vmatprep.mubr.f32.mxu0 0.0
        %1515 = vmatmul.mubr.f32.gmra.mrb[0].mxu0 %v1421
        %v1516 = vpop.f32.mrb[0].mxu0
        %v1517 = vadd.f32 %v1387, %v1516
        %v1518 = vpop.f32.mrb[0].mxu0
        %v1519 = vadd.f32 %v1387, %v1518
        %1520 = vmatprep.mubr.f32.mxu0 0.0
        %1521 = vmatmul.mubr.f32.gmra.mrb[0].mxu0 %v1424
        %v1522 = vpop.f32.mrb[0].mxu0
        %v1523 = vadd.f32 %v1392, %v1522
        %v1524 = vpop.f32.mrb[0].mxu0
        %v1525 = vadd.f32 %v1392, %v1524
        %1526 = vmatprep.mubr.f32.mxu0 0.0
        %1527 = vmatmul.mubr.f32.gmra.mrb[0].mxu0 %v1427
        %v1528 = vpop.f32.mrb[0].mxu0
        %v1529 = vadd.f32 %v1397, %v1528
        %v1530 = vpop.f32.mrb[0].mxu0
        %v1531 = vadd.f32 %v1397, %v1530
        %1532 = vmatprep.mubr.f32.mxu0 0.0
        %1533 = vmatmul.mubr.f32.gmra.mrb[0].mxu0 %v1430
        %v1534 = vpop.f32.mrb[0].mxu0
        %v1535 = vadd.f32 %v1402, %v1534
        %v1536 = vpop.f32.mrb[0].mxu0
        %v1537 = vadd.f32 %v1402, %v1536
        %1538 = vmatprep.mubr.f32.mxu0 0.0
        %1539 = vmatmul.mubr.f32.gmra.mrb[0].mxu0 %v1433
        %v1540 = vpop.f32.mrb[0].mxu0
        %v1541 = vadd.f32 %v1407, %v1540
        %v1542 = vpop.f32.mrb[0].mxu0
        %v1543 = vadd.f32 %v1407, %v1542
        %1544 = vmatprep.mubr.f32.mxu0 0.0
        %1545 = vmatmul.mubr.f32.gmra.mrb[0].mxu0 %v1436
        %v1546 = vpop.f32.mrb[0].mxu0
        %v1547 = vadd.f32 %v1412, %v1546
        %v1548 = vpop.f32.mrb[0].mxu0
        %v1549 = vadd.f32 %v1412, %v1548
        %1550 = vdwg.mxu0
        %1551 = vmatprep.subr.mxu0 %v1353
        %1552 = vmatpush1.msra.mxu0 %v1352
        %1553 = vmatprep.subr.mxu0 %v1357
        %1554 = vmatpush1.msra.mxu0 %v1356
        %1555 = vmatprep.subr.mxu0 0.0
        %1556 = vmatpush1.msra.mxu0 0.0
        %1557 = vmatprep.subr.mxu0 0.0
        %1558 = vmatpush1.msra.mxu0 0.0
        %1559 = vmatprep.subr.mxu0 0.0
        %1560 = vmatpush1.msra.mxu0 0.0
        %1561 = vmatprep.subr.mxu0 0.0
        %1562 = vmatpush1.msra.mxu0 0.0
        %1563 = vmatprep.subr.mxu0 0.0
        %1564 = vmatpush1.msra.mxu0 0.0
        %1565 = vmatprep.subr.mxu0 0.0
        %1566 = vmatpush1.msra.mxu0 0.0
        %1567 = vmatprep.subr.mxu0 0.0
        %1568 = vmatpush1.msra.mxu0 0.0
        %1569 = vmatprep.subr.mxu0 0.0
        %1570 = vmatpush1.msra.mxu0 0.0
        %1571 = vmatprep.subr.mxu0 0.0
        %1572 = vmatpush1.msra.mxu0 0.0
        %1573 = vmatprep.subr.mxu0 0.0
        %1574 = vmatpush1.msra.mxu0 0.0
        %1575 = vmatprep.subr.mxu0 0.0
        %1576 = vmatpush1.msra.mxu0 0.0
        %1577 = vmatprep.subr.mxu0 0.0
        %1578 = vmatpush1.msra.mxu0 0.0
        %1579 = vmatprep.subr.mxu0 0.0
        %1580 = vmatpush1.msra.mxu0 0.0
        %1581 = vmatprep.subr.mxu0 0.0
        %1582 = vmatpush1.msra.mxu0 0.0
        %1583 = vmatprep.subr.mxu0 0.0
        %1584 = vmatpush1.msra.mxu0 0.0
        %1585 = vmatprep.subr.mxu0 0.0
        %1586 = vmatpush1.msra.mxu0 0.0
        %1587 = vmatprep.subr.mxu0 0.0
        %1588 = vmatpush1.msra.mxu0 0.0
        %1589 = vmatprep.subr.mxu0 0.0
        %1590 = vmatpush1.msra.mxu0 0.0
        %1591 = vmatprep.subr.mxu0 0.0
        %1592 = vmatpush1.msra.mxu0 0.0
        %1593 = vmatprep.subr.mxu0 0.0
        %1594 = vmatpush1.msra.mxu0 0.0
        %1595 = vmatprep.subr.mxu0 0.0
        %1596 = vmatpush1.msra.mxu0 0.0
        %1597 = vmatprep.subr.mxu0 0.0
        %1598 = vmatpush1.msra.mxu0 0.0
        %1599 = vmatprep.subr.mxu0 0.0
        %1600 = vmatpush1.msra.mxu0 0.0
        %1601 = vmatprep.subr.mxu0 0.0
        %1602 = vmatpush1.msra.mxu0 0.0
        %1603 = vmatprep.subr.mxu0 0.0
        %1604 = vmatpush1.msra.mxu0 0.0
        %1605 = vmatprep.subr.mxu0 0.0
        %1606 = vmatpush1.msra.mxu0 0.0
        %1607 = vmatprep.subr.mxu0 0.0
        %1608 = vmatpush1.msra.mxu0 0.0
        %1609 = vmatprep.subr.mxu0 0.0
        %1610 = vmatpush1.msra.mxu0 0.0
        %1611 = vmatprep.subr.mxu0 0.0
        %1612 = vmatpush1.msra.mxu0 0.0
        %1613 = vmatprep.subr.mxu0 0.0
        %1614 = vmatpush1.msra.mxu0 0.0
        %1615 = vmatprep.mubr.f32.mxu0 0.0
        %1616 = vmatmul.mubr.f32.gmra.mrb[0].mxu0 %v1415
        %v1617 = vpop.f32.mrb[0].mxu0
        %v1618 = vadd.f32 %v1377, %v1617
        %v1619 = vpop.f32.mrb[0].mxu0
        %v1620 = vadd.f32 %v1377, %v1619
        %1621 = vmatprep.mubr.f32.mxu0 0.0
        %1622 = vmatmul.mubr.f32.gmra.mrb[0].mxu0 %v1418
        %v1623 = vpop.f32.mrb[0].mxu0
        %v1624 = vadd.f32 %v1382, %v1623
        %v1625 = vpop.f32.mrb[0].mxu0
        %v1626 = vadd.f32 %v1382, %v1625
        %1627 = vmatprep.mubr.f32.mxu0 0.0
        %1628 = vmatmul.mubr.f32.gmra.mrb[0].mxu0 %v1421
        %v1629 = vpop.f32.mrb[0].mxu0
        %v1630 = vadd.f32 %v1387, %v1629
        %v1631 = vpop.f32.mrb[0].mxu0
        %v1632 = vadd.f32 %v1387, %v1631
        %1633 = vmatprep.mubr.f32.mxu0 0.0
        %1634 = vmatmul.mubr.f32.gmra.mrb[0].mxu0 %v1424
        %v1635 = vpop.f32.mrb[0].mxu0
        %v1636 = vadd.f32 %v1392, %v1635
        %v1637 = vpop.f32.mrb[0].mxu0
        %v1638 = vadd.f32 %v1392, %v1637
        %1639 = vmatprep.mubr.f32.mxu0 0.0
        %1640 = vmatmul.mubr.f32.gmra.mrb[0].mxu0 %v1427
        %v1641 = vpop.f32.mrb[0].mxu0
        %v1642 = vadd.f32 %v1397, %v1641
        %v1643 = vpop.f32.mrb[0].mxu0
        %v1644 = vadd.f32 %v1397, %v1643
        %1645 = vmatprep.mubr.f32.mxu0 0.0
        %1646 = vmatmul.mubr.f32.gmra.mrb[0].mxu0 %v1430
        %v1647 = vpop.f32.mrb[0].mxu0
        %v1648 = vadd.f32 %v1402, %v1647
        %v1649 = vpop.f32.mrb[0].mxu0
        %v1650 = vadd.f32 %v1402, %v1649
        %1651 = vmatprep.mubr.f32.mxu0 0.0
        %1652 = vmatmul.mubr.f32.gmra.mrb[0].mxu0 %v1433
        %v1653 = vpop.f32.mrb[0].mxu0
        %v1654 = vadd.f32 %v1407, %v1653
        %v1655 = vpop.f32.mrb[0].mxu0
        %v1656 = vadd.f32 %v1407, %v1655
        %1657 = vmatprep.mubr.f32.mxu0 0.0
        %1658 = vmatmul.mubr.f32.gmra.mrb[0].mxu0 %v1436
        %v1659 = vpop.f32.mrb[0].mxu0
        %v1660 = vadd.f32 %v1412, %v1659
        %v1661 = vpop.f32.mrb[0].mxu0
        %v1662 = vadd.f32 %v1412, %v1661
        %1663 = vdwg.mxu0
        %v1664 = vadd.f32 %v1505, %v384
        %v1665 = vadd.f32 %v1507, %v385
        %v1666 = vadd.f32 %v1618, %v386
        %v1667 = vadd.f32 %v1620, %v387
        %v1668 = vadd.f32 %v1511, %v388
        %v1669 = vadd.f32 %v1513, %v389
        %v1670 = vadd.f32 %v1624, %v390
        %v1671 = vadd.f32 %v1626, %v391
        %v1672 = vadd.f32 %v1517, %v392
        %v1673 = vadd.f32 %v1519, %v393
        %v1674 = vadd.f32 %v1630, %v394
        %v1675 = vadd.f32 %v1632, %v395
        %v1676 = vadd.f32 %v1523, %v396
        %v1677 = vadd.f32 %v1525, %v397
        %v1678 = vadd.f32 %v1636, %v398
        %v1679 = vadd.f32 %v1638, %v399
        %v1680 = vadd.f32 %v1529, %v400
        %v1681 = vadd.f32 %v1531, %v401
        %v1682 = vadd.f32 %v1642, %v402
        %v1683 = vadd.f32 %v1644, %v403
        %v1684 = vadd.f32 %v1535, %v404
        %v1685 = vadd.f32 %v1537, %v405
        %v1686 = vadd.f32 %v1648, %v406
        %v1687 = vadd.f32 %v1650, %v407
        %v1688 = vadd.f32 %v1541, %v408
        %v1689 = vadd.f32 %v1543, %v409
        %v1690 = vadd.f32 %v1654, %v410
        %v1691 = vadd.f32 %v1656, %v411
        %v1692 = vadd.f32 %v1547, %v412
        %v1693 = vadd.f32 %v1549, %v413
        %v1694 = vadd.f32 %v1660, %v414
        %v1695 = vadd.f32 %v1662, %v415
        %vm1696 = vcmp.ge.f32.partialorder %v1664, 0.0
        %vm1697 = vcmp.ge.f32.partialorder %v1665, 0.0
        %vm1698 = vcmp.ge.f32.partialorder %v1666, 0.0
        %vm1699 = vcmp.ge.f32.partialorder %v1667, 0.0
        %vm1700 = vcmp.ge.f32.partialorder %v1668, 0.0
        %vm1701 = vcmp.ge.f32.partialorder %v1669, 0.0
        %vm1702 = vcmp.ge.f32.partialorder %v1670, 0.0
        %vm1703 = vcmp.ge.f32.partialorder %v1671, 0.0
        %vm1704 = vcmp.ge.f32.partialorder %v1672, 0.0
        %vm1705 = vcmp.ge.f32.partialorder %v1673, 0.0
        %vm1706 = vcmp.ge.f32.partialorder %v1674, 0.0
        %vm1707 = vcmp.ge.f32.partialorder %v1675, 0.0
        %vm1708 = vcmp.ge.f32.partialorder %v1676, 0.0
        %vm1709 = vcmp.ge.f32.partialorder %v1677, 0.0
        %vm1710 = vcmp.ge.f32.partialorder %v1678, 0.0
        %vm1711 = vcmp.ge.f32.partialorder %v1679, 0.0
        %vm1712 = vcmp.ge.f32.partialorder %v1680, 0.0
        %vm1713 = vcmp.ge.f32.partialorder %v1681, 0.0
        %vm1714 = vcmp.ge.f32.partialorder %v1682, 0.0
        %vm1715 = vcmp.ge.f32.partialorder %v1683, 0.0
        %vm1716 = vcmp.ge.f32.partialorder %v1684, 0.0
        %vm1717 = vcmp.ge.f32.partialorder %v1685, 0.0
        %vm1718 = vcmp.ge.f32.partialorder %v1686, 0.0
        %vm1719 = vcmp.ge.f32.partialorder %v1687, 0.0
        %vm1720 = vcmp.ge.f32.partialorder %v1688, 0.0
        %vm1721 = vcmp.ge.f32.partialorder %v1689, 0.0
        %vm1722 = vcmp.ge.f32.partialorder %v1690, 0.0
        %vm1723 = vcmp.ge.f32.partialorder %v1691, 0.0
        %vm1724 = vcmp.ge.f32.partialorder %v1692, 0.0
        %vm1725 = vcmp.ge.f32.partialorder %v1693, 0.0
        %vm1726 = vcmp.ge.f32.partialorder %v1694, 0.0
        %vm1727 = vcmp.ge.f32.partialorder %v1695, 0.0
        %v1728 = vmul.f32 %v1664, 0.01
        %v1729 = vmul.f32 %v1665, 0.01
        %v1730 = vmul.f32 %v1666, 0.01
        %v1731 = vmul.f32 %v1667, 0.01
        %v1732 = vmul.f32 %v1668, 0.01
        %v1733 = vmul.f32 %v1669, 0.01
        %v1734 = vmul.f32 %v1670, 0.01
        %v1735 = vmul.f32 %v1671, 0.01
        %v1736 = vmul.f32 %v1672, 0.01
        %v1737 = vmul.f32 %v1673, 0.01
        %v1738 = vmul.f32 %v1674, 0.01
        %v1739 = vmul.f32 %v1675, 0.01
        %v1740 = vmul.f32 %v1676, 0.01
        %v1741 = vmul.f32 %v1677, 0.01
        %v1742 = vmul.f32 %v1678, 0.01
        %v1743 = vmul.f32 %v1679, 0.01
        %v1744 = vmul.f32 %v1680, 0.01
        %v1745 = vmul.f32 %v1681, 0.01
        %v1746 = vmul.f32 %v1682, 0.01
        %v1747 = vmul.f32 %v1683, 0.01
        %v1748 = vmul.f32 %v1684, 0.01
        %v1749 = vmul.f32 %v1685, 0.01
        %v1750 = vmul.f32 %v1686, 0.01
        %v1751 = vmul.f32 %v1687, 0.01
        %v1752 = vmul.f32 %v1688, 0.01
        %v1753 = vmul.f32 %v1689, 0.01
        %v1754 = vmul.f32 %v1690, 0.01
        %v1755 = vmul.f32 %v1691, 0.01
        %v1756 = vmul.f32 %v1692, 0.01
        %v1757 = vmul.f32 %v1693, 0.01
        %v1758 = vmul.f32 %v1694, 0.01
        %v1759 = vmul.f32 %v1695, 0.01
        %v1760 = vsel %vm1696, %v1664, %v1728
        %v1761 = vsel %vm1697, %v1665, %v1729
        %v1762 = vsel %vm1698, %v1666, %v1730
        %v1763 = vsel %vm1699, %v1667, %v1731
        %v1764 = vsel %vm1700, %v1668, %v1732
        %v1765 = vsel %vm1701, %v1669, %v1733
        %v1766 = vsel %vm1702, %v1670, %v1734
        %v1767 = vsel %vm1703, %v1671, %v1735
        %v1768 = vsel %vm1704, %v1672, %v1736
        %v1769 = vsel %vm1705, %v1673, %v1737
        %v1770 = vsel %vm1706, %v1674, %v1738
        %v1771 = vsel %vm1707, %v1675, %v1739
        %v1772 = vsel %vm1708, %v1676, %v1740
        %v1773 = vsel %vm1709, %v1677, %v1741
        %v1774 = vsel %vm1710, %v1678, %v1742
        %v1775 = vsel %vm1711, %v1679, %v1743
        %v1776 = vsel %vm1712, %v1680, %v1744
        %v1777 = vsel %vm1713, %v1681, %v1745
        %v1778 = vsel %vm1714, %v1682, %v1746
        %v1779 = vsel %vm1715, %v1683, %v1747
        %v1780 = vsel %vm1716, %v1684, %v1748
        %v1781 = vsel %vm1717, %v1685, %v1749
        %v1782 = vsel %vm1718, %v1686, %v1750
        %v1783 = vsel %vm1719, %v1687, %v1751
        %v1784 = vsel %vm1720, %v1688, %v1752
        %v1785 = vsel %vm1721, %v1689, %v1753
        %v1786 = vsel %vm1722, %v1690, %v1754
        %v1787 = vsel %vm1723, %v1691, %v1755
        %v1788 = vsel %vm1724, %v1692, %v1756
        %v1789 = vsel %vm1725, %v1693, %v1757
        %v1790 = vsel %vm1726, %v1694, %v1758
        %v1791 = vsel %vm1727, %v1695, %v1759
        %1792 = vst [vmem:[%s381] sm:$0xff] %v1760
        %1793 = vst [vmem:[%s381 + $0x8] sm:$0xff] %v1761
        %1794 = vst [vmem:[%s381 + $0x10] sm:$0xff] %v1762
        %1795 = vst [vmem:[%s381 + $0x18] sm:$0xff] %v1763
        %1796 = vst [vmem:[%s381 + $0x20] sm:$0xff] %v1764
        %1797 = vst [vmem:[%s381 + $0x28] sm:$0xff] %v1765
        %1798 = vst [vmem:[%s381 + $0x30] sm:$0xff] %v1766
        %1799 = vst [vmem:[%s381 + $0x38] sm:$0xff] %v1767
        %1800 = vst [vmem:[%s381 + $0x40] sm:$0xff] %v1768
        %1801 = vst [vmem:[%s381 + $0x48] sm:$0xff] %v1769
        %1802 = vst [vmem:[%s381 + $0x50] sm:$0xff] %v1770
        %1803 = vst [vmem:[%s381 + $0x58] sm:$0xff] %v1771
        %1804 = vst [vmem:[%s381 + $0x60] sm:$0xff] %v1772
        %1805 = vst [vmem:[%s381 + $0x68] sm:$0xff] %v1773
        %1806 = vst [vmem:[%s381 + $0x70] sm:$0xff] %v1774
        %1807 = vst [vmem:[%s381 + $0x78] sm:$0xff] %v1775
        %1808 = vst [vmem:[%s381 + $0x80] sm:$0xff] %v1776
        %1809 = vst [vmem:[%s381 + $0x88] sm:$0xff] %v1777
        %1810 = vst [vmem:[%s381 + $0x90] sm:$0xff] %v1778
        %1811 = vst [vmem:[%s381 + $0x98] sm:$0xff] %v1779
        %1812 = vst [vmem:[%s381 + $0xa0] sm:$0xff] %v1780
        %1813 = vst [vmem:[%s381 + $0xa8] sm:$0xff] %v1781
        %1814 = vst [vmem:[%s381 + $0xb0] sm:$0xff] %v1782
        %1815 = vst [vmem:[%s381 + $0xb8] sm:$0xff] %v1783
        %1816 = vst [vmem:[%s381 + $0xc0] sm:$0xff] %v1784
        %1817 = vst [vmem:[%s381 + $0xc8] sm:$0xff] %v1785
        %1818 = vst [vmem:[%s381 + $0xd0] sm:$0xff] %v1786
        %1819 = vst [vmem:[%s381 + $0xd8] sm:$0xff] %v1787
        %1820 = vst [vmem:[%s381 + $0xe0] sm:$0xff] %v1788
        %1821 = vst [vmem:[%s381 + $0xe8] sm:$0xff] %v1789
        %1822 = vst [vmem:[%s381 + $0xf0] sm:$0xff] %v1790
        %1823 = vst [vmem:[%s381 + $0xf8] sm:$0xff] %v1791
        %s1824 = sand.u32 %s200, 1
        %s1825 = sand.u32 %s200, 1
        %s1826 = smul.addr %s1825, 256
        %s1827 = scalar_lea.vmem [#allocation4], %s1826
        // Predicated region
        $region76: #{bottleneck_forward.1} parent=70 // pred_check
          %p1828 = pneg %p210
        $region77: #{bottleneck_forward.1} parent=70 // pred_check_branch
          %1830 = sbr.rel (%p1828) target = $region79
        $region78: #{bottleneck_forward.1} parent=70 // pred_region
          %s1831 = smul.u32 4, %s19
          %s1832 = smul.addr %s1831, 8
          %s1833 = scalar_lea.vmem %s8, %s1832
          // Predicated region
          $region80: #{bottleneck_forward.1} parent=78 // pred_check
            _
          $region81: #{bottleneck_forward.1} parent=78 // pred_check_branch
            %1835 = sbr.rel (0) target = $region83
          $region82: #{bottleneck_forward.1} parent=78 // pred_region
            // Predicated region
            $region84: #{bottleneck_forward.1} parent=82 // pred_check
              _
            $region85: #{bottleneck_forward.1} parent=82 // pred_check_branch
              %1837 = sbr.rel (0) target = $region87
            $region86: #{bottleneck_forward.1} parent=82 // pred_region
              loop: start=0, step=1, limit=1
              $region88: #{bottleneck_forward.1} parent=86 // loop_pre_header
                _
              $region89: #{bottleneck_forward.1} parent=86 // loop_header
                %s1839 = sphi 0, %s1843
                %p1840 = scmp.ge.s32.totalorder %s1839, 1
                %s1844 = sphi %s1827, %s1827
                %s1845 = sphi %s1833, %s1833
              $region90: #{bottleneck_forward.1} parent=86 // loop_header_branch
                %1842 = sbr.rel (%p1840) target = $region94
              $region91: #{bottleneck_forward.1} parent=86 // loop_body
                %v1846 = vld [vmem:[%s1844] sm:$0xff]
                %1847 = vst [vmem:[%s1845] sm:$0xff] %v1846
                %v1848 = vld [vmem:[%s1844 + $0x8] sm:$0xff]
                %1849 = vst [vmem:[%s1845 + $0x8] sm:$0xff] %v1848
                %v1850 = vld [vmem:[%s1844 + $0x10] sm:$0xff]
                %1851 = vst [vmem:[%s1845 + $0x10] sm:$0xff] %v1850
                %v1852 = vld [vmem:[%s1844 + $0x18] sm:$0xff]
                %1853 = vst [vmem:[%s1845 + $0x18] sm:$0xff] %v1852
                %v1854 = vld [vmem:[%s1844 + $0x20] sm:$0xff]
                %1855 = vst [vmem:[%s1845 + $0x40] sm:$0xff] %v1854
                %v1856 = vld [vmem:[%s1844 + $0x28] sm:$0xff]
                %1857 = vst [vmem:[%s1845 + $0x48] sm:$0xff] %v1856
                %v1858 = vld [vmem:[%s1844 + $0x30] sm:$0xff]
                %1859 = vst [vmem:[%s1845 + $0x50] sm:$0xff] %v1858
                %v1860 = vld [vmem:[%s1844 + $0x38] sm:$0xff]
                %1861 = vst [vmem:[%s1845 + $0x58] sm:$0xff] %v1860
                %v1862 = vld [vmem:[%s1844 + $0x40] sm:$0xff]
                %1863 = vst [vmem:[%s1845 + $0x80] sm:$0xff] %v1862
                %v1864 = vld [vmem:[%s1844 + $0x48] sm:$0xff]
                %1865 = vst [vmem:[%s1845 + $0x88] sm:$0xff] %v1864
                %v1866 = vld [vmem:[%s1844 + $0x50] sm:$0xff]
                %1867 = vst [vmem:[%s1845 + $0x90] sm:$0xff] %v1866
                %v1868 = vld [vmem:[%s1844 + $0x58] sm:$0xff]
                %1869 = vst [vmem:[%s1845 + $0x98] sm:$0xff] %v1868
                %v1870 = vld [vmem:[%s1844 + $0x60] sm:$0xff]
                %1871 = vst [vmem:[%s1845 + $0xc0] sm:$0xff] %v1870
                %v1872 = vld [vmem:[%s1844 + $0x68] sm:$0xff]
                %1873 = vst [vmem:[%s1845 + $0xc8] sm:$0xff] %v1872
                %v1874 = vld [vmem:[%s1844 + $0x70] sm:$0xff]
                %1875 = vst [vmem:[%s1845 + $0xd0] sm:$0xff] %v1874
                %v1876 = vld [vmem:[%s1844 + $0x78] sm:$0xff]
                %1877 = vst [vmem:[%s1845 + $0xd8] sm:$0xff] %v1876
                %v1878 = vld [vmem:[%s1844 + $0x80] sm:$0xff]
                %1879 = vst [vmem:[%s1845 + $0x100] sm:$0xff] %v1878
                %v1880 = vld [vmem:[%s1844 + $0x88] sm:$0xff]
                %1881 = vst [vmem:[%s1845 + $0x108] sm:$0xff] %v1880
                %v1882 = vld [vmem:[%s1844 + $0x90] sm:$0xff]
                %1883 = vst [vmem:[%s1845 + $0x110] sm:$0xff] %v1882
                %v1884 = vld [vmem:[%s1844 + $0x98] sm:$0xff]
                %1885 = vst [vmem:[%s1845 + $0x118] sm:$0xff] %v1884
                %v1886 = vld [vmem:[%s1844 + $0xa0] sm:$0xff]
                %1887 = vst [vmem:[%s1845 + $0x140] sm:$0xff] %v1886
                %v1888 = vld [vmem:[%s1844 + $0xa8] sm:$0xff]
                %1889 = vst [vmem:[%s1845 + $0x148] sm:$0xff] %v1888
                %v1890 = vld [vmem:[%s1844 + $0xb0] sm:$0xff]
                %1891 = vst [vmem:[%s1845 + $0x150] sm:$0xff] %v1890
                %v1892 = vld [vmem:[%s1844 + $0xb8] sm:$0xff]
                %1893 = vst [vmem:[%s1845 + $0x158] sm:$0xff] %v1892
                %v1894 = vld [vmem:[%s1844 + $0xc0] sm:$0xff]
                %1895 = vst [vmem:[%s1845 + $0x180] sm:$0xff] %v1894
                %v1896 = vld [vmem:[%s1844 + $0xc8] sm:$0xff]
                %1897 = vst [vmem:[%s1845 + $0x188] sm:$0xff] %v1896
                %v1898 = vld [vmem:[%s1844 + $0xd0] sm:$0xff]
                %1899 = vst [vmem:[%s1845 + $0x190] sm:$0xff] %v1898
                %v1900 = vld [vmem:[%s1844 + $0xd8] sm:$0xff]
                %1901 = vst [vmem:[%s1845 + $0x198] sm:$0xff] %v1900
                %v1902 = vld [vmem:[%s1844 + $0xe0] sm:$0xff]
                %1903 = vst [vmem:[%s1845 + $0x1c0] sm:$0xff] %v1902
                %v1904 = vld [vmem:[%s1844 + $0xe8] sm:$0xff]
                %1905 = vst [vmem:[%s1845 + $0x1c8] sm:$0xff] %v1904
                %v1906 = vld [vmem:[%s1844 + $0xf0] sm:$0xff]
                %1907 = vst [vmem:[%s1845 + $0x1d0] sm:$0xff] %v1906
                %v1908 = vld [vmem:[%s1844 + $0xf8] sm:$0xff]
                %1909 = vst [vmem:[%s1845 + $0x1d8] sm:$0xff] %v1908
              $region92: #{bottleneck_forward.1} parent=86 // loop_footer
                %s1843 = sadd.s32 1, %s1839
              $region93: #{bottleneck_forward.1} parent=86 // loop_footer_branch
                %1838 = sbr.rel target = $region89
              $region94: #{bottleneck_forward.1} parent=86 // loop_exit
                _
            $region87: #{bottleneck_forward.1} parent=82 // pred_fallthru
              _
            // Predicated region
            $region95: #{bottleneck_forward.1} parent=82 // pred_check
              _
            $region96: #{bottleneck_forward.1} parent=82 // pred_check_branch
              %1911 = sbr.rel target = $region98
            $region97: #{bottleneck_forward.1} parent=82 // pred_region
              _
            $region98: #{bottleneck_forward.1} parent=82 // pred_fallthru
              _
          $region83: #{bottleneck_forward.1} parent=78 // pred_fallthru
            _
          %1912 = vnop
        $region79: #{bottleneck_forward.1} parent=70 // pred_fallthru
          _
      $region71: #{bottleneck_forward.1} parent=5 // pred_fallthru
        _
      %p1913 = scmp.le.s32.totalorder 2, %s14
      // Predicated region
      $region99: #{bottleneck_forward.1} parent=5 // pred_check
        %p1914 = pneg %p1913
      $region100: #{bottleneck_forward.1} parent=5 // pred_check_branch
        %1916 = sbr.rel (%p1914) target = $region102
      $region101: #{bottleneck_forward.1} parent=5 // pred_region
        %s1917 = ssub.s32 %s14, 2
        // Predicated region
        $region103: #{bottleneck_forward.1} parent=101 // pred_check
          %p1918 = pneg %p216
        $region104: #{bottleneck_forward.1} parent=101 // pred_check_branch
          %1920 = sbr.rel (%p1918) target = $region106
        $region105: #{bottleneck_forward.1} parent=101 // pred_region
          %s1921 = sand.u32 %s201, 1
          %s1922 = sand.u32 %s201, 1
          %s1923 = smul.addr %s1922, 256
          %s1924 = scalar_lea.vmem [#allocation4], %s1923
        $region106: #{bottleneck_forward.1} parent=101 // pred_fallthru
          _
      $region102: #{bottleneck_forward.1} parent=5 // pred_fallthru
        _
    $region6: #{bottleneck_forward.1} parent=1 // loop_footer
      %s18 = sadd.s32 1, %s14
    $region7: #{bottleneck_forward.1} parent=1 // loop_footer_branch
      %13 = sbr.rel target = $region3
    $region8: #{bottleneck_forward.1} parent=1 // loop_exit
      _

</llo_original>
